<compile_context>
chip_gen: v6e
topology: v6e:2x2x1
jax: 0.10.0
libtpu: 0.0.40
codegen_flags: <defaults>
</compile_context>

<pallas_src>
import numpy as np
import jax
import jax.numpy as jnp
from jax.experimental import pallas as pl
from jax.experimental.pallas import tpu as pltpu

IN_CH, CONV_CH, HID, ALPHA = 27, 32, 64, 26
QPAD = 128          # lane-dense padded q width
BN_EPS = 1e-5


def hangman_dqn_kernel(
    xcat_ref,    # (L*B, 81)  bf16  time-major rows; cols = [x[t-1] | x[t] | x[t+1]] channels
    ag_ref,      # (B, 27)    bf16  [alphabet_state | num_guesses]
    sel_ref,     # (L, B, 1)  f32   one-hot over t == word_length-1
    mask_ref,    # (B, 128)   f32   1.0 where letter already guessed (lanes >=26 are 0)
    convw_ref,   # (81, 32)   bf16  conv taps stacked along K (k=0,1,2)
    convb_ref,   # (1, 32)    f32
    bn_g_ref,    # (1, 32)    f32   batchnorm gamma
    bn_b_ref,    # (1, 32)    f32   batchnorm beta
    w_ih_ref,    # (32, 256)  bf16  lstm.weight_ih_l0.T (gate order i,f,g,o)
    w_hh_ref,    # (64, 256)  bf16  lstm.weight_hh_l0.T
    b_lstm_ref,  # (1, 256)   f32   b_ih + b_hh
    w1l_ref,     # (64, 64)   bf16  Linear(91,64) rows acting on lstm_features
    w1ag_ref,    # (27, 64)   bf16  Linear(91,64) rows acting on [alphabet | guesses]
    b1_ref,      # (1, 64)    f32
    w2_ref,      # (64, 128)  bf16  Linear(64,26) zero-padded to 128 output lanes
    b2_ref,      # (1, 128)   f32   zero-padded
    q_ref,       # out: (B, 128) f32
):
    LB = xcat_ref.shape[0]
    L, B, _ = sel_ref.shape

    # ---- Conv1d(27 -> 32, k=3, pad=1): one fused (L*B, 81) @ (81, 32) MXU matmul ----
    conv = (jnp.dot(xcat_ref[...], convw_ref[...],
                    preferred_element_type=jnp.float32)
            + convb_ref[...])                                       # (L*B, 32) f32

    # ---- BatchNorm1d(32), training-mode batch stats over all B*L positions, + ReLU ----
    mean = jnp.mean(conv, axis=0, keepdims=True)
    var = jnp.mean((conv - mean) ** 2, axis=0, keepdims=True)
    conv = (conv - mean) * jax.lax.rsqrt(var + BN_EPS) * bn_g_ref[...] + bn_b_ref[...]
    conv = jnp.maximum(conv, 0.0)

    # ---- LSTM(32 -> 64): input projection hoisted out of the recurrence ----
    gates_x = (jnp.dot(conv.astype(jnp.bfloat16), w_ih_ref[...],
                       preferred_element_type=jnp.float32)
               + b_lstm_ref[...])                                   # (L*B, 256) f32
    gates_x = gates_x.reshape(L, B, 4 * HID)                        # time-major tiles
    sel_all = sel_ref[...]                                          # (L, B, 1) f32
    w_hh = w_hh_ref[...]

    h = jnp.zeros((B, HID), jnp.float32)
    c = jnp.zeros((B, HID), jnp.float32)
    feats = jnp.zeros((B, HID), jnp.float32)
    for t in range(L):                                              # L small & static
        g = gates_x[t] + jnp.dot(h.astype(jnp.bfloat16), w_hh,
                                 preferred_element_type=jnp.float32)   # (B, 256)
        i_g = jax.nn.sigmoid(g[:, 0 * HID:1 * HID])
        f_g = jax.nn.sigmoid(g[:, 1 * HID:2 * HID])
        g_g = jnp.tanh(g[:, 2 * HID:3 * HID])
        o_g = jax.nn.sigmoid(g[:, 3 * HID:4 * HID])
        c = f_g * c + i_g * g_g
        h = o_g * jnp.tanh(c)
        feats = feats + sel_all[t] * h                              # pick h at t == len-1

    # ---- combine_features: Linear(64+26+1 -> 64) split over the concat, + ReLU ----
    hidden = (jnp.dot(feats.astype(jnp.bfloat16), w1l_ref[...],
                      preferred_element_type=jnp.float32)
              + jnp.dot(ag_ref[...], w1ag_ref[...],
                        preferred_element_type=jnp.float32)
              + b1_ref[...])
    hidden = jnp.maximum(hidden, 0.0)

    # ---- Linear(64 -> 26) padded to 128 lanes, then masked_fill(guessed, -inf) ----
    q = (jnp.dot(hidden.astype(jnp.bfloat16), w2_ref[...],
                 preferred_element_type=jnp.float32)
         + b2_ref[...])                                             # (B, 128)
    q_ref[...] = jnp.where(mask_ref[...] > 0.5, -jnp.inf, q)


def init_params(key):
    ks = jax.random.split(key, 11)
    u = lambda k, shape, s=0.1: s * jax.random.uniform(k, shape, jnp.float32, -1.0, 1.0)
    return dict(
        conv_w=u(ks[0], (3, IN_CH, CONV_CH)),       # [k, ci, co] == torch weight[co, ci, k].T
        conv_b=u(ks[1], (1, CONV_CH)),
        bn_gamma=jnp.ones((1, CONV_CH), jnp.float32),
        bn_beta=jnp.zeros((1, CONV_CH), jnp.float32),
        w_ih=u(ks[2], (CONV_CH, 4 * HID)),
        w_hh=u(ks[3], (HID, 4 * HID)),
        b_lstm=u(ks[4], (1, 4 * HID)),
        w1_lstm=u(ks[5], (HID, HID)),
        w1_alpha=u(ks[6], (ALPHA, HID)),
        w1_guess=u(ks[7], (1, HID)),
        b1=u(ks[8], (1, HID)),
        w2=u(ks[9], (HID, ALPHA)),
        b2=u(ks[10], (1, ALPHA)),
    )


def hangman_dqn_forward(word_state, alphabet_state, num_guesses, word_length, params):
    B, L, _ = word_state.shape
    f32, bf16 = jnp.float32, jnp.bfloat16

    # --- wrapper-side layout plumbing (handled by XLA before the DMA) ---
    ws = word_state.astype(f32)
    xp = jnp.pad(ws, ((0, 0), (1, 1), (0, 0)))                       # pad along L
    x_cat = jnp.concatenate([xp[:, 0:L], xp[:, 1:L + 1], xp[:, 2:L + 2]],
                            axis=-1)                                 # (B, L, 81)
    x_cat = x_cat.transpose(1, 0, 2).reshape(L * B, 3 * IN_CH).astype(bf16)   # time-major

    alpha = alphabet_state.astype(f32)
    guesses = num_guesses.astype(f32).reshape(B, 1)
    ag = jnp.concatenate([alpha, guesses], axis=-1).astype(bf16)     # (B, 27)

    lens = word_length.astype(jnp.int32).reshape(B)
    sel = (lens[None, :] == jnp.arange(1, L + 1, dtype=jnp.int32)[:, None])
    sel = sel.astype(f32)[:, :, None]                                # (L, B, 1)

    mask = jnp.pad((alpha >= 0.5).astype(f32), ((0, 0), (0, QPAD - ALPHA)))   # (B, 128)

    conv_w = params['conv_w'].reshape(3 * IN_CH, CONV_CH).astype(bf16)        # (81, 32)
    w1ag = jnp.concatenate([params['w1_alpha'], params['w1_guess']], axis=0).astype(bf16)
    w2_pad = jnp.pad(params['w2'], ((0, 0), (0, QPAD - ALPHA))).astype(bf16)  # (64, 128)
    b2_pad = jnp.pad(params['b2'], ((0, 0), (0, QPAD - ALPHA)))               # (1, 128)

    args = (
        x_cat, ag, sel, mask,
        conv_w, params['conv_b'], params['bn_gamma'], params['bn_beta'],
        params['w_ih'].astype(bf16), params['w_hh'].astype(bf16), params['b_lstm'],
        params['w1_lstm'].astype(bf16), w1ag, params['b1'],
        w2_pad, b2_pad,
    )
    q_pad = pl.pallas_call(
        hangman_dqn_kernel,
        out_shape=jax.ShapeDtypeStruct((B, QPAD), jnp.float32),
        in_specs=[pl.BlockSpec(memory_space=pltpu.MemorySpace.VMEM)] * len(args),
        out_specs=pl.BlockSpec(memory_space=pltpu.MemorySpace.VMEM),
    )(*args)
    return q_pad[:, :ALPHA]


def reference_forward(word_state, alphabet_state, num_guesses, word_length, params):
    """Pure-JAX reference mirroring the PyTorch forward (bf16 matmul operands,
    f32 accumulation, same as the kernel's MXU path)."""
    B, L, _ = word_state.shape
    f32, bf16 = jnp.float32, jnp.bfloat16
    bdot = lambda a, b: jnp.dot(a.astype(bf16), b.astype(bf16),
                                preferred_element_type=jnp.float32)

    xp = jnp.pad(word_state.astype(f32), ((0, 0), (1, 1), (0, 0)))
    x_cat = jnp.concatenate([xp[:, 0:L], xp[:, 1:L + 1], xp[:, 2:L + 2]],
                            axis=-1).reshape(B * L, 3 * IN_CH)
    conv = bdot(x_cat, params['conv_w'].reshape(3 * IN_CH, CONV_CH)) + params['conv_b']
    mean = conv.mean(0, keepdims=True)
    var = ((conv - mean) ** 2).mean(0, keepdims=True)
    conv = (conv - mean) * jax.lax.rsqrt(var + BN_EPS) * params['bn_gamma'] + params['bn_beta']
    conv = jnp.maximum(conv, 0.0).reshape(B, L, CONV_CH)

    h = jnp.zeros((B, HID), f32)
    c = jnp.zeros((B, HID), f32)
    feats = jnp.zeros((B, HID), f32)
    lens = word_length.reshape(B, 1)
    for t in range(L):
        gates = bdot(conv[:, t], params['w_ih']) + bdot(h, params['w_hh']) + params['b_lstm']
        i_g = jax.nn.sigmoid(gates[:, :HID])
        f_g = jax.nn.sigmoid(gates[:, HID:2 * HID])
        g_g = jnp.tanh(gates[:, 2 * HID:3 * HID])
        o_g = jax.nn.sigmoid(gates[:, 3 * HID:])
        c = f_g * c + i_g * g_g
        h = o_g * jnp.tanh(c)
        feats = feats + (lens == (t + 1)).astype(f32) * h

    hidden = jnp.maximum(
        bdot(feats, params['w1_lstm'])
        + bdot(alphabet_state, params['w1_alpha'])
        + bdot(num_guesses.reshape(B, 1), params['w1_guess'])
        + params['b1'], 0.0)
    q = bdot(hidden, params['w2']) + params['b2']
    return jnp.where(alphabet_state == 1.0, -jnp.inf, q)


if __name__ == "__main__":
    key = jax.random.PRNGKey(0)
    kp, kw, ka, kg, kl = jax.random.split(key, 5)
    B, L = 2, 8                                    # small shapes; max_word_length analogue L=8
    params = init_params(kp)

    word_state = jax.random.uniform(kw, (B, L, IN_CH), jnp.float32)           # (B, L, 27)
    alphabet_state = (jax.random.uniform(ka, (B, ALPHA)) > 0.7).astype(jnp.float32)
    num_guesses = jax.random.randint(kg, (B, 1), 0, 6).astype(jnp.float32)
    word_length = jax.random.randint(kl, (B,), 3, L + 1).astype(jnp.int32)

    q = hangman_dqn_forward(word_state, alphabet_state, num_guesses, word_length, params)
    q = jax.block_until_ready(q)

    q_ref = reference_forward(word_state, alphabet_state, num_guesses, word_length, params)
    assert q.shape == (B, ALPHA)
    assert np.allclose(np.asarray(q), np.asarray(q_ref), rtol=5e-3, atol=5e-3), \
        "mismatch vs reference"

    print("KERNEL_OK")
</pallas_src>

<mosaic_0001>
module attributes {stable_mosaic.version = 11 : i64} {
  func.func @hangman_dqn_kernel(%arg0: memref<16x81xbf16, #tpu.memory_space<vmem>>, %arg1: memref<2x27xbf16, #tpu.memory_space<vmem>>, %arg2: memref<8x2x1xf32, #tpu.memory_space<vmem>>, %arg3: memref<2x128xf32, #tpu.memory_space<vmem>>, %arg4: memref<81x32xbf16, #tpu.memory_space<vmem>>, %arg5: memref<1x32xf32, #tpu.memory_space<vmem>>, %arg6: memref<1x32xf32, #tpu.memory_space<vmem>>, %arg7: memref<1x32xf32, #tpu.memory_space<vmem>>, %arg8: memref<32x256xbf16, #tpu.memory_space<vmem>>, %arg9: memref<64x256xbf16, #tpu.memory_space<vmem>>, %arg10: memref<1x256xf32, #tpu.memory_space<vmem>>, %arg11: memref<64x64xbf16, #tpu.memory_space<vmem>>, %arg12: memref<27x64xbf16, #tpu.memory_space<vmem>>, %arg13: memref<1x64xf32, #tpu.memory_space<vmem>>, %arg14: memref<64x128xbf16, #tpu.memory_space<vmem>>, %arg15: memref<1x128xf32, #tpu.memory_space<vmem>>, %arg16: memref<2x128xf32, #tpu.memory_space<vmem>>) attributes {dimension_semantics = [], scalar_prefetch = 0 : i64, scratch_operands = 0 : i64, tpu.core_type = #tpu.core_type<tc>} {
    %c0 = arith.constant 0 : index
    %c0_0 = arith.constant 0 : index
    %0 = vector.load %arg0[%c0, %c0_0] : memref<16x81xbf16, #tpu.memory_space<vmem>>, vector<16x81xbf16>
    %c0_1 = arith.constant 0 : index
    %c0_2 = arith.constant 0 : index
    %1 = vector.load %arg4[%c0_1, %c0_2] : memref<81x32xbf16, #tpu.memory_space<vmem>>, vector<81x32xbf16>
    %cst = arith.constant dense<0.000000e+00> : vector<16x32xf32>
    %2 = tpu.matmul %0, %1, %cst {dimension_numbers = #tpu.dot_dimension_numbers<[1], [0], [0], [1], [0, 0, 1, 1], [], []>} : vector<16x81xbf16>, vector<81x32xbf16>, vector<16x32xf32> -> vector<16x32xf32>
    %c0_3 = arith.constant 0 : index
    %c0_4 = arith.constant 0 : index
    %3 = vector.load %arg5[%c0_3, %c0_4] : memref<1x32xf32, #tpu.memory_space<vmem>>, vector<1x32xf32>
    %4 = vector.broadcast %3 : vector<1x32xf32> to vector<16x32xf32>
    %5 = arith.addf %2, %4 : vector<16x32xf32>
    %cst_5 = arith.constant dense<0.000000e+00> : vector<32xf32>
    %6 = vector.multi_reduction <add>, %5, %cst_5 [0] : vector<16x32xf32> to vector<32xf32>
    %7 = vector.shape_cast %6 : vector<32xf32> to vector<1x32xf32>
    %cst_6 = arith.constant 1.600000e+01 : f32
    %8 = vector.broadcast %cst_6 : f32 to vector<1x32xf32>
    %9 = arith.divf %7, %8 : vector<1x32xf32>
    %10 = vector.broadcast %9 : vector<1x32xf32> to vector<16x32xf32>
    %11 = arith.subf %5, %10 : vector<16x32xf32>
    %12 = arith.mulf %11, %11 : vector<16x32xf32>
    %cst_7 = arith.constant dense<0.000000e+00> : vector<32xf32>
    %13 = vector.multi_reduction <add>, %12, %cst_7 [0] : vector<16x32xf32> to vector<32xf32>
    %14 = vector.shape_cast %13 : vector<32xf32> to vector<1x32xf32>
    %cst_8 = arith.constant 1.600000e+01 : f32
    %15 = vector.broadcast %cst_8 : f32 to vector<1x32xf32>
    %16 = arith.divf %14, %15 : vector<1x32xf32>
    %17 = vector.broadcast %9 : vector<1x32xf32> to vector<16x32xf32>
    %18 = arith.subf %5, %17 : vector<16x32xf32>
    %cst_9 = arith.constant 9.99999974E-6 : f32
    %19 = vector.broadcast %cst_9 : f32 to vector<1x32xf32>
    %20 = arith.addf %16, %19 : vector<1x32xf32>
    %21 = math.rsqrt %20 : vector<1x32xf32>
    %22 = vector.broadcast %21 : vector<1x32xf32> to vector<16x32xf32>
    %23 = arith.mulf %18, %22 : vector<16x32xf32>
    %c0_10 = arith.constant 0 : index
    %c0_11 = arith.constant 0 : index
    %24 = vector.load %arg6[%c0_10, %c0_11] : memref<1x32xf32, #tpu.memory_space<vmem>>, vector<1x32xf32>
    %25 = vector.broadcast %24 : vector<1x32xf32> to vector<16x32xf32>
    %26 = arith.mulf %23, %25 : vector<16x32xf32>
    %c0_12 = arith.constant 0 : index
    %c0_13 = arith.constant 0 : index
    %27 = vector.load %arg7[%c0_12, %c0_13] : memref<1x32xf32, #tpu.memory_space<vmem>>, vector<1x32xf32>
    %28 = vector.broadcast %27 : vector<1x32xf32> to vector<16x32xf32>
    %29 = arith.addf %26, %28 : vector<16x32xf32>
    %cst_14 = arith.constant 0.000000e+00 : f32
    %30 = vector.broadcast %cst_14 : f32 to vector<16x32xf32>
    %31 = arith.maximumf %29, %30 : vector<16x32xf32>
    %32 = arith.truncf %31 : vector<16x32xf32> to vector<16x32xbf16>
    %c0_15 = arith.constant 0 : index
    %c0_16 = arith.constant 0 : index
    %33 = vector.load %arg8[%c0_15, %c0_16] : memref<32x256xbf16, #tpu.memory_space<vmem>>, vector<32x256xbf16>
    %cst_17 = arith.constant dense<0.000000e+00> : vector<16x256xf32>
    %34 = tpu.matmul %32, %33, %cst_17 {dimension_numbers = #tpu.dot_dimension_numbers<[1], [0], [0], [1], [0, 0, 1, 1], [], []>} : vector<16x32xbf16>, vector<32x256xbf16>, vector<16x256xf32> -> vector<16x256xf32>
    %c0_18 = arith.constant 0 : index
    %c0_19 = arith.constant 0 : index
    %35 = vector.load %arg10[%c0_18, %c0_19] : memref<1x256xf32, #tpu.memory_space<vmem>>, vector<1x256xf32>
    %36 = vector.broadcast %35 : vector<1x256xf32> to vector<16x256xf32>
    %37 = arith.addf %34, %36 : vector<16x256xf32>
    %38 = vector.shape_cast %37 : vector<16x256xf32> to vector<8x2x256xf32>
    %c0_20 = arith.constant 0 : index
    %c0_21 = arith.constant 0 : index
    %c0_22 = arith.constant 0 : index
    %39 = vector.load %arg2[%c0_20, %c0_21, %c0_22] : memref<8x2x1xf32, #tpu.memory_space<vmem>>, vector<8x2x1xf32>
    %c0_23 = arith.constant 0 : index
    %c0_24 = arith.constant 0 : index
    %40 = vector.load %arg9[%c0_23, %c0_24] : memref<64x256xbf16, #tpu.memory_space<vmem>>, vector<64x256xbf16>
    %cst_25 = arith.constant 0.000000e+00 : f32
    %41 = vector.broadcast %cst_25 : f32 to vector<2x64xf32>
    %cst_26 = arith.constant 0.000000e+00 : f32
    %42 = vector.broadcast %cst_26 : f32 to vector<2x64xf32>
    %cst_27 = arith.constant 0.000000e+00 : f32
    %43 = vector.broadcast %cst_27 : f32 to vector<2x64xf32>
    %44 = vector.extract_strided_slice %38 {offsets = [0, 0, 0], sizes = [1, 2, 256], strides = [1, 1, 1]} : vector<8x2x256xf32> to vector<1x2x256xf32>
    %45 = vector.shape_cast %44 : vector<1x2x256xf32> to vector<2x256xf32>
    %46 = arith.truncf %41 : vector<2x64xf32> to vector<2x64xbf16>
    %cst_28 = arith.constant dense<0.000000e+00> : vector<2x256xf32>
    %47 = tpu.matmul %46, %40, %cst_28 {dimension_numbers = #tpu.dot_dimension_numbers<[1], [0], [0], [1], [0, 0, 1, 1], [], []>} : vector<2x64xbf16>, vector<64x256xbf16>, vector<2x256xf32> -> vector<2x256xf32>
    %48 = arith.addf %45, %47 : vector<2x256xf32>
    %49 = vector.extract_strided_slice %48 {offsets = [0, 0], sizes = [2, 64], strides = [1, 1]} : vector<2x256xf32> to vector<2x64xf32>
    %50 = arith.negf %49 : vector<2x64xf32>
    %51 = math.exp %50 : vector<2x64xf32>
    %cst_29 = arith.constant 1.000000e+00 : f32
    %52 = vector.broadcast %cst_29 : f32 to vector<2x64xf32>
    %53 = arith.addf %52, %51 : vector<2x64xf32>
    %54 = arith.divf %52, %53 : vector<2x64xf32>
    %55 = vector.extract_strided_slice %48 {offsets = [0, 64], sizes = [2, 64], strides = [1, 1]} : vector<2x256xf32> to vector<2x64xf32>
    %56 = arith.negf %55 : vector<2x64xf32>
    %57 = math.exp %56 : vector<2x64xf32>
    %cst_30 = arith.constant 1.000000e+00 : f32
    %58 = vector.broadcast %cst_30 : f32 to vector<2x64xf32>
    %59 = arith.addf %58, %57 : vector<2x64xf32>
    %60 = arith.divf %58, %59 : vector<2x64xf32>
    %61 = vector.extract_strided_slice %48 {offsets = [0, 128], sizes = [2, 64], strides = [1, 1]} : vector<2x256xf32> to vector<2x64xf32>
    %62 = math.tanh %61 : vector<2x64xf32>
    %63 = vector.extract_strided_slice %48 {offsets = [0, 192], sizes = [2, 64], strides = [1, 1]} : vector<2x256xf32> to vector<2x64xf32>
    %64 = arith.negf %63 : vector<2x64xf32>
    %65 = math.exp %64 : vector<2x64xf32>
    %cst_31 = arith.constant 1.000000e+00 : f32
    %66 = vector.broadcast %cst_31 : f32 to vector<2x64xf32>
    %67 = arith.addf %66, %65 : vector<2x64xf32>
    %68 = arith.divf %66, %67 : vector<2x64xf32>
    %69 = arith.mulf %60, %42 : vector<2x64xf32>
    %70 = arith.mulf %54, %62 : vector<2x64xf32>
    %71 = arith.addf %69, %70 : vector<2x64xf32>
    %72 = math.tanh %71 : vector<2x64xf32>
    %73 = arith.mulf %68, %72 : vector<2x64xf32>
    %74 = vector.extract_strided_slice %39 {offsets = [0, 0, 0], sizes = [1, 2, 1], strides = [1, 1, 1]} : vector<8x2x1xf32> to vector<1x2x1xf32>
    %75 = vector.shape_cast %74 : vector<1x2x1xf32> to vector<2x1xf32>
    %76 = vector.broadcast %75 : vector<2x1xf32> to vector<2x64xf32>
    %77 = arith.mulf %76, %73 : vector<2x64xf32>
    %78 = arith.addf %43, %77 : vector<2x64xf32>
    %79 = vector.extract_strided_slice %38 {offsets = [1, 0, 0], sizes = [1, 2, 256], strides = [1, 1, 1]} : vector<8x2x256xf32> to vector<1x2x256xf32>
    %80 = vector.shape_cast %79 : vector<1x2x256xf32> to vector<2x256xf32>
    %81 = arith.truncf %73 : vector<2x64xf32> to vector<2x64xbf16>
    %cst_32 = arith.constant dense<0.000000e+00> : vector<2x256xf32>
    %82 = tpu.matmul %81, %40, %cst_32 {dimension_numbers = #tpu.dot_dimension_numbers<[1], [0], [0], [1], [0, 0, 1, 1], [], []>} : vector<2x64xbf16>, vector<64x256xbf16>, vector<2x256xf32> -> vector<2x256xf32>
    %83 = arith.addf %80, %82 : vector<2x256xf32>
    %84 = vector.extract_strided_slice %83 {offsets = [0, 0], sizes = [2, 64], strides = [1, 1]} : vector<2x256xf32> to vector<2x64xf32>
    %85 = arith.negf %84 : vector<2x64xf32>
    %86 = math.exp %85 : vector<2x64xf32>
    %cst_33 = arith.constant 1.000000e+00 : f32
    %87 = vector.broadcast %cst_33 : f32 to vector<2x64xf32>
    %88 = arith.addf %87, %86 : vector<2x64xf32>
    %89 = arith.divf %87, %88 : vector<2x64xf32>
    %90 = vector.extract_strided_slice %83 {offsets = [0, 64], sizes = [2, 64], strides = [1, 1]} : vector<2x256xf32> to vector<2x64xf32>
    %91 = arith.negf %90 : vector<2x64xf32>
    %92 = math.exp %91 : vector<2x64xf32>
    %cst_34 = arith.constant 1.000000e+00 : f32
    %93 = vector.broadcast %cst_34 : f32 to vector<2x64xf32>
    %94 = arith.addf %93, %92 : vector<2x64xf32>
    %95 = arith.divf %93, %94 : vector<2x64xf32>
    %96 = vector.extract_strided_slice %83 {offsets = [0, 128], sizes = [2, 64], strides = [1, 1]} : vector<2x256xf32> to vector<2x64xf32>
    %97 = math.tanh %96 : vector<2x64xf32>
    %98 = vector.extract_strided_slice %83 {offsets = [0, 192], sizes = [2, 64], strides = [1, 1]} : vector<2x256xf32> to vector<2x64xf32>
    %99 = arith.negf %98 : vector<2x64xf32>
    %100 = math.exp %99 : vector<2x64xf32>
    %cst_35 = arith.constant 1.000000e+00 : f32
    %101 = vector.broadcast %cst_35 : f32 to vector<2x64xf32>
    %102 = arith.addf %101, %100 : vector<2x64xf32>
    %103 = arith.divf %101, %102 : vector<2x64xf32>
    %104 = arith.mulf %95, %71 : vector<2x64xf32>
    %105 = arith.mulf %89, %97 : vector<2x64xf32>
    %106 = arith.addf %104, %105 : vector<2x64xf32>
    %107 = math.tanh %106 : vector<2x64xf32>
    %108 = arith.mulf %103, %107 : vector<2x64xf32>
    %109 = vector.extract_strided_slice %39 {offsets = [1, 0, 0], sizes = [1, 2, 1], strides = [1, 1, 1]} : vector<8x2x1xf32> to vector<1x2x1xf32>
    %110 = vector.shape_cast %109 : vector<1x2x1xf32> to vector<2x1xf32>
    %111 = vector.broadcast %110 : vector<2x1xf32> to vector<2x64xf32>
    %112 = arith.mulf %111, %108 : vector<2x64xf32>
    %113 = arith.addf %78, %112 : vector<2x64xf32>
    %114 = vector.extract_strided_slice %38 {offsets = [2, 0, 0], sizes = [1, 2, 256], strides = [1, 1, 1]} : vector<8x2x256xf32> to vector<1x2x256xf32>
    %115 = vector.shape_cast %114 : vector<1x2x256xf32> to vector<2x256xf32>
    %116 = arith.truncf %108 : vector<2x64xf32> to vector<2x64xbf16>
    %cst_36 = arith.constant dense<0.000000e+00> : vector<2x256xf32>
    %117 = tpu.matmul %116, %40, %cst_36 {dimension_numbers = #tpu.dot_dimension_numbers<[1], [0], [0], [1], [0, 0, 1, 1], [], []>} : vector<2x64xbf16>, vector<64x256xbf16>, vector<2x256xf32> -> vector<2x256xf32>
    %118 = arith.addf %115, %117 : vector<2x256xf32>
    %119 = vector.extract_strided_slice %118 {offsets = [0, 0], sizes = [2, 64], strides = [1, 1]} : vector<2x256xf32> to vector<2x64xf32>
    %120 = arith.negf %119 : vector<2x64xf32>
    %121 = math.exp %120 : vector<2x64xf32>
    %cst_37 = arith.constant 1.000000e+00 : f32
    %122 = vector.broadcast %cst_37 : f32 to vector<2x64xf32>
    %123 = arith.addf %122, %121 : vector<2x64xf32>
    %124 = arith.divf %122, %123 : vector<2x64xf32>
    %125 = vector.extract_strided_slice %118 {offsets = [0, 64], sizes = [2, 64], strides = [1, 1]} : vector<2x256xf32> to vector<2x64xf32>
    %126 = arith.negf %125 : vector<2x64xf32>
    %127 = math.exp %126 : vector<2x64xf32>
    %cst_38 = arith.constant 1.000000e+00 : f32
    %128 = vector.broadcast %cst_38 : f32 to vector<2x64xf32>
    %129 = arith.addf %128, %127 : vector<2x64xf32>
    %130 = arith.divf %128, %129 : vector<2x64xf32>
    %131 = vector.extract_strided_slice %118 {offsets = [0, 128], sizes = [2, 64], strides = [1, 1]} : vector<2x256xf32> to vector<2x64xf32>
    %132 = math.tanh %131 : vector<2x64xf32>
    %133 = vector.extract_strided_slice %118 {offsets = [0, 192], sizes = [2, 64], strides = [1, 1]} : vector<2x256xf32> to vector<2x64xf32>
    %134 = arith.negf %133 : vector<2x64xf32>
    %135 = math.exp %134 : vector<2x64xf32>
    %cst_39 = arith.constant 1.000000e+00 : f32
    %136 = vector.broadcast %cst_39 : f32 to vector<2x64xf32>
    %137 = arith.addf %136, %135 : vector<2x64xf32>
    %138 = arith.divf %136, %137 : vector<2x64xf32>
    %139 = arith.mulf %130, %106 : vector<2x64xf32>
    %140 = arith.mulf %124, %132 : vector<2x64xf32>
    %141 = arith.addf %139, %140 : vector<2x64xf32>
    %142 = math.tanh %141 : vector<2x64xf32>
    %143 = arith.mulf %138, %142 : vector<2x64xf32>
    %144 = vector.extract_strided_slice %39 {offsets = [2, 0, 0], sizes = [1, 2, 1], strides = [1, 1, 1]} : vector<8x2x1xf32> to vector<1x2x1xf32>
    %145 = vector.shape_cast %144 : vector<1x2x1xf32> to vector<2x1xf32>
    %146 = vector.broadcast %145 : vector<2x1xf32> to vector<2x64xf32>
    %147 = arith.mulf %146, %143 : vector<2x64xf32>
    %148 = arith.addf %113, %147 : vector<2x64xf32>
    %149 = vector.extract_strided_slice %38 {offsets = [3, 0, 0], sizes = [1, 2, 256], strides = [1, 1, 1]} : vector<8x2x256xf32> to vector<1x2x256xf32>
    %150 = vector.shape_cast %149 : vector<1x2x256xf32> to vector<2x256xf32>
    %151 = arith.truncf %143 : vector<2x64xf32> to vector<2x64xbf16>
    %cst_40 = arith.constant dense<0.000000e+00> : vector<2x256xf32>
    %152 = tpu.matmul %151, %40, %cst_40 {dimension_numbers = #tpu.dot_dimension_numbers<[1], [0], [0], [1], [0, 0, 1, 1], [], []>} : vector<2x64xbf16>, vector<64x256xbf16>, vector<2x256xf32> -> vector<2x256xf32>
    %153 = arith.addf %150, %152 : vector<2x256xf32>
    %154 = vector.extract_strided_slice %153 {offsets = [0, 0], sizes = [2, 64], strides = [1, 1]} : vector<2x256xf32> to vector<2x64xf32>
    %155 = arith.negf %154 : vector<2x64xf32>
    %156 = math.exp %155 : vector<2x64xf32>
    %cst_41 = arith.constant 1.000000e+00 : f32
    %157 = vector.broadcast %cst_41 : f32 to vector<2x64xf32>
    %158 = arith.addf %157, %156 : vector<2x64xf32>
    %159 = arith.divf %157, %158 : vector<2x64xf32>
    %160 = vector.extract_strided_slice %153 {offsets = [0, 64], sizes = [2, 64], strides = [1, 1]} : vector<2x256xf32> to vector<2x64xf32>
    %161 = arith.negf %160 : vector<2x64xf32>
    %162 = math.exp %161 : vector<2x64xf32>
    %cst_42 = arith.constant 1.000000e+00 : f32
    %163 = vector.broadcast %cst_42 : f32 to vector<2x64xf32>
    %164 = arith.addf %163, %162 : vector<2x64xf32>
    %165 = arith.divf %163, %164 : vector<2x64xf32>
    %166 = vector.extract_strided_slice %153 {offsets = [0, 128], sizes = [2, 64], strides = [1, 1]} : vector<2x256xf32> to vector<2x64xf32>
    %167 = math.tanh %166 : vector<2x64xf32>
    %168 = vector.extract_strided_slice %153 {offsets = [0, 192], sizes = [2, 64], strides = [1, 1]} : vector<2x256xf32> to vector<2x64xf32>
    %169 = arith.negf %168 : vector<2x64xf32>
    %170 = math.exp %169 : vector<2x64xf32>
    %cst_43 = arith.constant 1.000000e+00 : f32
    %171 = vector.broadcast %cst_43 : f32 to vector<2x64xf32>
    %172 = arith.addf %171, %170 : vector<2x64xf32>
    %173 = arith.divf %171, %172 : vector<2x64xf32>
    %174 = arith.mulf %165, %141 : vector<2x64xf32>
    %175 = arith.mulf %159, %167 : vector<2x64xf32>
    %176 = arith.addf %174, %175 : vector<2x64xf32>
    %177 = math.tanh %176 : vector<2x64xf32>
    %178 = arith.mulf %173, %177 : vector<2x64xf32>
    %179 = vector.extract_strided_slice %39 {offsets = [3, 0, 0], sizes = [1, 2, 1], strides = [1, 1, 1]} : vector<8x2x1xf32> to vector<1x2x1xf32>
    %180 = vector.shape_cast %179 : vector<1x2x1xf32> to vector<2x1xf32>
    %181 = vector.broadcast %180 : vector<2x1xf32> to vector<2x64xf32>
    %182 = arith.mulf %181, %178 : vector<2x64xf32>
    %183 = arith.addf %148, %182 : vector<2x64xf32>
    %184 = vector.extract_strided_slice %38 {offsets = [4, 0, 0], sizes = [1, 2, 256], strides = [1, 1, 1]} : vector<8x2x256xf32> to vector<1x2x256xf32>
    %185 = vector.shape_cast %184 : vector<1x2x256xf32> to vector<2x256xf32>
    %186 = arith.truncf %178 : vector<2x64xf32> to vector<2x64xbf16>
    %cst_44 = arith.constant dense<0.000000e+00> : vector<2x256xf32>
    %187 = tpu.matmul %186, %40, %cst_44 {dimension_numbers = #tpu.dot_dimension_numbers<[1], [0], [0], [1], [0, 0, 1, 1], [], []>} : vector<2x64xbf16>, vector<64x256xbf16>, vector<2x256xf32> -> vector<2x256xf32>
    %188 = arith.addf %185, %187 : vector<2x256xf32>
    %189 = vector.extract_strided_slice %188 {offsets = [0, 0], sizes = [2, 64], strides = [1, 1]} : vector<2x256xf32> to vector<2x64xf32>
    %190 = arith.negf %189 : vector<2x64xf32>
    %191 = math.exp %190 : vector<2x64xf32>
    %cst_45 = arith.constant 1.000000e+00 : f32
    %192 = vector.broadcast %cst_45 : f32 to vector<2x64xf32>
    %193 = arith.addf %192, %191 : vector<2x64xf32>
    %194 = arith.divf %192, %193 : vector<2x64xf32>
    %195 = vector.extract_strided_slice %188 {offsets = [0, 64], sizes = [2, 64], strides = [1, 1]} : vector<2x256xf32> to vector<2x64xf32>
    %196 = arith.negf %195 : vector<2x64xf32>
    %197 = math.exp %196 : vector<2x64xf32>
    %cst_46 = arith.constant 1.000000e+00 : f32
    %198 = vector.broadcast %cst_46 : f32 to vector<2x64xf32>
    %199 = arith.addf %198, %197 : vector<2x64xf32>
    %200 = arith.divf %198, %199 : vector<2x64xf32>
    %201 = vector.extract_strided_slice %188 {offsets = [0, 128], sizes = [2, 64], strides = [1, 1]} : vector<2x256xf32> to vector<2x64xf32>
    %202 = math.tanh %201 : vector<2x64xf32>
    %203 = vector.extract_strided_slice %188 {offsets = [0, 192], sizes = [2, 64], strides = [1, 1]} : vector<2x256xf32> to vector<2x64xf32>
    %204 = arith.negf %203 : vector<2x64xf32>
    %205 = math.exp %204 : vector<2x64xf32>
    %cst_47 = arith.constant 1.000000e+00 : f32
    %206 = vector.broadcast %cst_47 : f32 to vector<2x64xf32>
    %207 = arith.addf %206, %205 : vector<2x64xf32>
    %208 = arith.divf %206, %207 : vector<2x64xf32>
    %209 = arith.mulf %200, %176 : vector<2x64xf32>
    %210 = arith.mulf %194, %202 : vector<2x64xf32>
    %211 = arith.addf %209, %210 : vector<2x64xf32>
    %212 = math.tanh %211 : vector<2x64xf32>
    %213 = arith.mulf %208, %212 : vector<2x64xf32>
    %214 = vector.extract_strided_slice %39 {offsets = [4, 0, 0], sizes = [1, 2, 1], strides = [1, 1, 1]} : vector<8x2x1xf32> to vector<1x2x1xf32>
    %215 = vector.shape_cast %214 : vector<1x2x1xf32> to vector<2x1xf32>
    %216 = vector.broadcast %215 : vector<2x1xf32> to vector<2x64xf32>
    %217 = arith.mulf %216, %213 : vector<2x64xf32>
    %218 = arith.addf %183, %217 : vector<2x64xf32>
    %219 = vector.extract_strided_slice %38 {offsets = [5, 0, 0], sizes = [1, 2, 256], strides = [1, 1, 1]} : vector<8x2x256xf32> to vector<1x2x256xf32>
    %220 = vector.shape_cast %219 : vector<1x2x256xf32> to vector<2x256xf32>
    %221 = arith.truncf %213 : vector<2x64xf32> to vector<2x64xbf16>
    %cst_48 = arith.constant dense<0.000000e+00> : vector<2x256xf32>
    %222 = tpu.matmul %221, %40, %cst_48 {dimension_numbers = #tpu.dot_dimension_numbers<[1], [0], [0], [1], [0, 0, 1, 1], [], []>} : vector<2x64xbf16>, vector<64x256xbf16>, vector<2x256xf32> -> vector<2x256xf32>
    %223 = arith.addf %220, %222 : vector<2x256xf32>
    %224 = vector.extract_strided_slice %223 {offsets = [0, 0], sizes = [2, 64], strides = [1, 1]} : vector<2x256xf32> to vector<2x64xf32>
    %225 = arith.negf %224 : vector<2x64xf32>
    %226 = math.exp %225 : vector<2x64xf32>
    %cst_49 = arith.constant 1.000000e+00 : f32
    %227 = vector.broadcast %cst_49 : f32 to vector<2x64xf32>
    %228 = arith.addf %227, %226 : vector<2x64xf32>
    %229 = arith.divf %227, %228 : vector<2x64xf32>
    %230 = vector.extract_strided_slice %223 {offsets = [0, 64], sizes = [2, 64], strides = [1, 1]} : vector<2x256xf32> to vector<2x64xf32>
    %231 = arith.negf %230 : vector<2x64xf32>
    %232 = math.exp %231 : vector<2x64xf32>
    %cst_50 = arith.constant 1.000000e+00 : f32
    %233 = vector.broadcast %cst_50 : f32 to vector<2x64xf32>
    %234 = arith.addf %233, %232 : vector<2x64xf32>
    %235 = arith.divf %233, %234 : vector<2x64xf32>
    %236 = vector.extract_strided_slice %223 {offsets = [0, 128], sizes = [2, 64], strides = [1, 1]} : vector<2x256xf32> to vector<2x64xf32>
    %237 = math.tanh %236 : vector<2x64xf32>
    %238 = vector.extract_strided_slice %223 {offsets = [0, 192], sizes = [2, 64], strides = [1, 1]} : vector<2x256xf32> to vector<2x64xf32>
    %239 = arith.negf %238 : vector<2x64xf32>
    %240 = math.exp %239 : vector<2x64xf32>
    %cst_51 = arith.constant 1.000000e+00 : f32
    %241 = vector.broadcast %cst_51 : f32 to vector<2x64xf32>
    %242 = arith.addf %241, %240 : vector<2x64xf32>
    %243 = arith.divf %241, %242 : vector<2x64xf32>
    %244 = arith.mulf %235, %211 : vector<2x64xf32>
    %245 = arith.mulf %229, %237 : vector<2x64xf32>
    %246 = arith.addf %244, %245 : vector<2x64xf32>
    %247 = math.tanh %246 : vector<2x64xf32>
    %248 = arith.mulf %243, %247 : vector<2x64xf32>
    %249 = vector.extract_strided_slice %39 {offsets = [5, 0, 0], sizes = [1, 2, 1], strides = [1, 1, 1]} : vector<8x2x1xf32> to vector<1x2x1xf32>
    %250 = vector.shape_cast %249 : vector<1x2x1xf32> to vector<2x1xf32>
    %251 = vector.broadcast %250 : vector<2x1xf32> to vector<2x64xf32>
    %252 = arith.mulf %251, %248 : vector<2x64xf32>
    %253 = arith.addf %218, %252 : vector<2x64xf32>
    %254 = vector.extract_strided_slice %38 {offsets = [6, 0, 0], sizes = [1, 2, 256], strides = [1, 1, 1]} : vector<8x2x256xf32> to vector<1x2x256xf32>
    %255 = vector.shape_cast %254 : vector<1x2x256xf32> to vector<2x256xf32>
    %256 = arith.truncf %248 : vector<2x64xf32> to vector<2x64xbf16>
    %cst_52 = arith.constant dense<0.000000e+00> : vector<2x256xf32>
    %257 = tpu.matmul %256, %40, %cst_52 {dimension_numbers = #tpu.dot_dimension_numbers<[1], [0], [0], [1], [0, 0, 1, 1], [], []>} : vector<2x64xbf16>, vector<64x256xbf16>, vector<2x256xf32> -> vector<2x256xf32>
    %258 = arith.addf %255, %257 : vector<2x256xf32>
    %259 = vector.extract_strided_slice %258 {offsets = [0, 0], sizes = [2, 64], strides = [1, 1]} : vector<2x256xf32> to vector<2x64xf32>
    %260 = arith.negf %259 : vector<2x64xf32>
    %261 = math.exp %260 : vector<2x64xf32>
    %cst_53 = arith.constant 1.000000e+00 : f32
    %262 = vector.broadcast %cst_53 : f32 to vector<2x64xf32>
    %263 = arith.addf %262, %261 : vector<2x64xf32>
    %264 = arith.divf %262, %263 : vector<2x64xf32>
    %265 = vector.extract_strided_slice %258 {offsets = [0, 64], sizes = [2, 64], strides = [1, 1]} : vector<2x256xf32> to vector<2x64xf32>
    %266 = arith.negf %265 : vector<2x64xf32>
    %267 = math.exp %266 : vector<2x64xf32>
    %cst_54 = arith.constant 1.000000e+00 : f32
    %268 = vector.broadcast %cst_54 : f32 to vector<2x64xf32>
    %269 = arith.addf %268, %267 : vector<2x64xf32>
    %270 = arith.divf %268, %269 : vector<2x64xf32>
    %271 = vector.extract_strided_slice %258 {offsets = [0, 128], sizes = [2, 64], strides = [1, 1]} : vector<2x256xf32> to vector<2x64xf32>
    %272 = math.tanh %271 : vector<2x64xf32>
    %273 = vector.extract_strided_slice %258 {offsets = [0, 192], sizes = [2, 64], strides = [1, 1]} : vector<2x256xf32> to vector<2x64xf32>
    %274 = arith.negf %273 : vector<2x64xf32>
    %275 = math.exp %274 : vector<2x64xf32>
    %cst_55 = arith.constant 1.000000e+00 : f32
    %276 = vector.broadcast %cst_55 : f32 to vector<2x64xf32>
    %277 = arith.addf %276, %275 : vector<2x64xf32>
    %278 = arith.divf %276, %277 : vector<2x64xf32>
    %279 = arith.mulf %270, %246 : vector<2x64xf32>
    %280 = arith.mulf %264, %272 : vector<2x64xf32>
    %281 = arith.addf %279, %280 : vector<2x64xf32>
    %282 = math.tanh %281 : vector<2x64xf32>
    %283 = arith.mulf %278, %282 : vector<2x64xf32>
    %284 = vector.extract_strided_slice %39 {offsets = [6, 0, 0], sizes = [1, 2, 1], strides = [1, 1, 1]} : vector<8x2x1xf32> to vector<1x2x1xf32>
    %285 = vector.shape_cast %284 : vector<1x2x1xf32> to vector<2x1xf32>
    %286 = vector.broadcast %285 : vector<2x1xf32> to vector<2x64xf32>
    %287 = arith.mulf %286, %283 : vector<2x64xf32>
    %288 = arith.addf %253, %287 : vector<2x64xf32>
    %289 = vector.extract_strided_slice %38 {offsets = [7, 0, 0], sizes = [1, 2, 256], strides = [1, 1, 1]} : vector<8x2x256xf32> to vector<1x2x256xf32>
    %290 = vector.shape_cast %289 : vector<1x2x256xf32> to vector<2x256xf32>
    %291 = arith.truncf %283 : vector<2x64xf32> to vector<2x64xbf16>
    %cst_56 = arith.constant dense<0.000000e+00> : vector<2x256xf32>
    %292 = tpu.matmul %291, %40, %cst_56 {dimension_numbers = #tpu.dot_dimension_numbers<[1], [0], [0], [1], [0, 0, 1, 1], [], []>} : vector<2x64xbf16>, vector<64x256xbf16>, vector<2x256xf32> -> vector<2x256xf32>
    %293 = arith.addf %290, %292 : vector<2x256xf32>
    %294 = vector.extract_strided_slice %293 {offsets = [0, 0], sizes = [2, 64], strides = [1, 1]} : vector<2x256xf32> to vector<2x64xf32>
    %295 = arith.negf %294 : vector<2x64xf32>
    %296 = math.exp %295 : vector<2x64xf32>
    %cst_57 = arith.constant 1.000000e+00 : f32
    %297 = vector.broadcast %cst_57 : f32 to vector<2x64xf32>
    %298 = arith.addf %297, %296 : vector<2x64xf32>
    %299 = arith.divf %297, %298 : vector<2x64xf32>
    %300 = vector.extract_strided_slice %293 {offsets = [0, 64], sizes = [2, 64], strides = [1, 1]} : vector<2x256xf32> to vector<2x64xf32>
    %301 = arith.negf %300 : vector<2x64xf32>
    %302 = math.exp %301 : vector<2x64xf32>
    %cst_58 = arith.constant 1.000000e+00 : f32
    %303 = vector.broadcast %cst_58 : f32 to vector<2x64xf32>
    %304 = arith.addf %303, %302 : vector<2x64xf32>
    %305 = arith.divf %303, %304 : vector<2x64xf32>
    %306 = vector.extract_strided_slice %293 {offsets = [0, 128], sizes = [2, 64], strides = [1, 1]} : vector<2x256xf32> to vector<2x64xf32>
    %307 = math.tanh %306 : vector<2x64xf32>
    %308 = vector.extract_strided_slice %293 {offsets = [0, 192], sizes = [2, 64], strides = [1, 1]} : vector<2x256xf32> to vector<2x64xf32>
    %309 = arith.negf %308 : vector<2x64xf32>
    %310 = math.exp %309 : vector<2x64xf32>
    %cst_59 = arith.constant 1.000000e+00 : f32
    %311 = vector.broadcast %cst_59 : f32 to vector<2x64xf32>
    %312 = arith.addf %311, %310 : vector<2x64xf32>
    %313 = arith.divf %311, %312 : vector<2x64xf32>
    %314 = arith.mulf %305, %281 : vector<2x64xf32>
    %315 = arith.mulf %299, %307 : vector<2x64xf32>
    %316 = arith.addf %314, %315 : vector<2x64xf32>
    %317 = math.tanh %316 : vector<2x64xf32>
    %318 = arith.mulf %313, %317 : vector<2x64xf32>
    %319 = vector.extract_strided_slice %39 {offsets = [7, 0, 0], sizes = [1, 2, 1], strides = [1, 1, 1]} : vector<8x2x1xf32> to vector<1x2x1xf32>
    %320 = vector.shape_cast %319 : vector<1x2x1xf32> to vector<2x1xf32>
    %321 = vector.broadcast %320 : vector<2x1xf32> to vector<2x64xf32>
    %322 = arith.mulf %321, %318 : vector<2x64xf32>
    %323 = arith.addf %288, %322 : vector<2x64xf32>
    %324 = arith.truncf %323 : vector<2x64xf32> to vector<2x64xbf16>
    %c0_60 = arith.constant 0 : index
    %c0_61 = arith.constant 0 : index
    %325 = vector.load %arg11[%c0_60, %c0_61] : memref<64x64xbf16, #tpu.memory_space<vmem>>, vector<64x64xbf16>
    %cst_62 = arith.constant dense<0.000000e+00> : vector<2x64xf32>
    %326 = tpu.matmul %324, %325, %cst_62 {dimension_numbers = #tpu.dot_dimension_numbers<[1], [0], [0], [1], [0, 0, 1, 1], [], []>} : vector<2x64xbf16>, vector<64x64xbf16>, vector<2x64xf32> -> vector<2x64xf32>
    %c0_63 = arith.constant 0 : index
    %c0_64 = arith.constant 0 : index
    %327 = vector.load %arg1[%c0_63, %c0_64] : memref<2x27xbf16, #tpu.memory_space<vmem>>, vector<2x27xbf16>
    %c0_65 = arith.constant 0 : index
    %c0_66 = arith.constant 0 : index
    %328 = vector.load %arg12[%c0_65, %c0_66] : memref<27x64xbf16, #tpu.memory_space<vmem>>, vector<27x64xbf16>
    %cst_67 = arith.constant dense<0.000000e+00> : vector<2x64xf32>
    %329 = tpu.matmul %327, %328, %cst_67 {dimension_numbers = #tpu.dot_dimension_numbers<[1], [0], [0], [1], [0, 0, 1, 1], [], []>} : vector<2x27xbf16>, vector<27x64xbf16>, vector<2x64xf32> -> vector<2x64xf32>
    %330 = arith.addf %326, %329 : vector<2x64xf32>
    %c0_68 = arith.constant 0 : index
    %c0_69 = arith.constant 0 : index
    %331 = vector.load %arg13[%c0_68, %c0_69] : memref<1x64xf32, #tpu.memory_space<vmem>>, vector<1x64xf32>
    %332 = vector.broadcast %331 : vector<1x64xf32> to vector<2x64xf32>
    %333 = arith.addf %330, %332 : vector<2x64xf32>
    %cst_70 = arith.constant 0.000000e+00 : f32
    %334 = vector.broadcast %cst_70 : f32 to vector<2x64xf32>
    %335 = arith.maximumf %333, %334 : vector<2x64xf32>
    %336 = arith.truncf %335 : vector<2x64xf32> to vector<2x64xbf16>
    %c0_71 = arith.constant 0 : index
    %c0_72 = arith.constant 0 : index
    %337 = vector.load %arg14[%c0_71, %c0_72] : memref<64x128xbf16, #tpu.memory_space<vmem>>, vector<64x128xbf16>
    %cst_73 = arith.constant dense<0.000000e+00> : vector<2x128xf32>
    %338 = tpu.matmul %336, %337, %cst_73 {dimension_numbers = #tpu.dot_dimension_numbers<[1], [0], [0], [1], [0, 0, 1, 1], [], []>} : vector<2x64xbf16>, vector<64x128xbf16>, vector<2x128xf32> -> vector<2x128xf32>
    %c0_74 = arith.constant 0 : index
    %c0_75 = arith.constant 0 : index
    %339 = vector.load %arg15[%c0_74, %c0_75] : memref<1x128xf32, #tpu.memory_space<vmem>>, vector<1x128xf32>
    %340 = vector.broadcast %339 : vector<1x128xf32> to vector<2x128xf32>
    %341 = arith.addf %338, %340 : vector<2x128xf32>
    %c0_76 = arith.constant 0 : index
    %c0_77 = arith.constant 0 : index
    %342 = vector.load %arg3[%c0_76, %c0_77] : memref<2x128xf32, #tpu.memory_space<vmem>>, vector<2x128xf32>
    %cst_78 = arith.constant 5.000000e-01 : f32
    %343 = vector.broadcast %cst_78 : f32 to vector<2x128xf32>
    %344 = arith.cmpf ogt, %342, %343 : vector<2x128xf32>
    %cst_79 = arith.constant 0xFF800000 : f32
    %345 = vector.broadcast %cst_79 : f32 to vector<2x128xf32>
    %346 = arith.select %344, %345, %341 : vector<2x128xi1>, vector<2x128xf32>
    %c0_80 = arith.constant 0 : index
    %c0_81 = arith.constant 0 : index
    %347 = vector.load %arg16[%c0_80, %c0_81] : memref<2x128xf32, #tpu.memory_space<vmem>>, vector<2x128xf32>
    tpu.vector_store %arg16[%c0_80, %c0_81], %346 {strides = array<i32>} : memref<2x128xf32, #tpu.memory_space<vmem>>, vector<2x128xf32>,
    return
  }
}

</mosaic_0001>

<llo_original>
// kernel: tpu_custom_call.1
$region0: #{tpu_custom_call.1}
  #allocation0 [shape = 'u32[]', space=smem, size = 0x4, offset = 0x4, fixed_abs, tag = 'smem constant byte address 0x4 - core index']
  #allocation1 [shape = 'u32[144,128]{1,0:T(1,128)}', space=vmem, size = 0x12000, scoped, tag = 'internal scratch']
  %s0 = inlined_call_operand.hbm [shape: bf16[16,81], index: 0, kind: input, shape index: {}]
  %s1 = inlined_call_operand.hbm [shape: bf16[2,27], index: 1, kind: input, shape index: {}]
  %s2 = inlined_call_operand.vmem [shape: f32[8,2,1], index: 2, kind: input, shape index: {}]
  %s3 = inlined_call_operand.hbm [shape: f32[2,128], index: 3, kind: input, shape index: {}]
  %s4 = inlined_call_operand.vmem [shape: bf16[81,32], index: 4, kind: input, shape index: {}]
  %s5 = inlined_call_operand.hbm [shape: f32[1,32], index: 5, kind: input, shape index: {}]
  %s6 = inlined_call_operand.hbm [shape: f32[1,32], index: 6, kind: input, shape index: {}]
  %s7 = inlined_call_operand.hbm [shape: f32[1,32], index: 7, kind: input, shape index: {}]
  %s8 = inlined_call_operand.hbm [shape: bf16[32,256], index: 8, kind: input, shape index: {}]
  %s9 = inlined_call_operand.vmem [shape: bf16[64,256], index: 9, kind: input, shape index: {}]
  %s10 = inlined_call_operand.hbm [shape: f32[1,256], index: 10, kind: input, shape index: {}]
  %s11 = inlined_call_operand.vmem [shape: bf16[64,64], index: 11, kind: input, shape index: {}]
  %s12 = inlined_call_operand.hbm [shape: bf16[27,64], index: 12, kind: input, shape index: {}]
  %s13 = inlined_call_operand.vmem [shape: f32[1,64], index: 13, kind: input, shape index: {}]
  %s14 = inlined_call_operand.hbm [shape: bf16[64,128], index: 14, kind: input, shape index: {}]
  %s15 = inlined_call_operand.vmem [shape: f32[1,128], index: 15, kind: input, shape index: {}]
  %s16 = inlined_call_operand.hbm [shape: f32[2,128], index: 16, kind: output, shape index: {}]
  %s17 = sld [smem:[#allocation0]]
  $region114: #{tpu_custom_call.1} parent=0
    _
  %s19 = ssub.s32 1, %s17
  %s20 = scalar_select 0, %s19, %s17
  $region1: #{tpu_custom_call.1} parent=0
    #allocation2 [shape = 'u8[4096]{0}', space=vmem, size = 0x1000, scoped, tag = 'input window, operand 0, single buffered']
    #allocation3 [shape = 's32[1]{0}', space=sflag, size = 0x4, scoped, tag = 'scoped memory for tpu_custom_call.1']
    #allocation4 [shape = 's32[1]{0}', space=sflag, size = 0x4, scoped, tag = 'scoped memory for tpu_custom_call.1']
    #allocation5 [shape = 'u8[512]{0}', space=vmem, size = 0x400, scoped, tag = 'input window, operand 1, single buffered']
    #allocation6 [shape = 's32[1]{0}', space=sflag, size = 0x4, scoped, tag = 'scoped memory for tpu_custom_call.1']
    #allocation7 [shape = 'u8[1024]{0}', space=vmem, size = 0x400, scoped, tag = 'input window, operand 3, single buffered']
    #allocation8 [shape = 'u8[512]{0}', space=vmem, size = 0x400, scoped, tag = 'input window, operand 5, single buffered']
    #allocation9 [shape = 's32[1]{0}', space=sflag, size = 0x4, scoped, tag = 'scoped memory for tpu_custom_call.1']
    #allocation10 [shape = 'u8[512]{0}', space=vmem, size = 0x400, scoped, tag = 'input window, operand 6, single buffered']
    #allocation11 [shape = 'u8[512]{0}', space=vmem, size = 0x400, scoped, tag = 'input window, operand 7, single buffered']
    #allocation12 [shape = 's32[1]{0}', space=sflag, size = 0x4, scoped, tag = 'scoped memory for tpu_custom_call.1']
    #allocation13 [shape = 'u8[16384]{0}', space=vmem, size = 0x4000, scoped, tag = 'input window, operand 8, single buffered']
    #allocation14 [shape = 'u8[1024]{0}', space=vmem, size = 0x400, scoped, tag = 'input window, operand 10, single buffered']
    #allocation15 [shape = 's32[1]{0}', space=sflag, size = 0x4, scoped, tag = 'scoped memory for tpu_custom_call.1']
    #allocation16 [shape = 'u8[8192]{0}', space=vmem, size = 0x2000, scoped, tag = 'input window, operand 12, single buffered']
    #allocation17 [shape = 'u8[16384]{0}', space=vmem, size = 0x4000, scoped, tag = 'input window, operand 14, single buffered']
    #allocation18 [shape = 's32[1]{0}', space=sflag, size = 0x4, scoped, tag = 'scoped memory for tpu_custom_call.1']
    #allocation19 [shape = 'u8[1024]{0}', space=vmem, size = 0x400, scoped, tag = 'output window, operand 0, single buffered']
    %21 = vsyncpa [#allocation3], 0
    %22 = vsyncpa [#allocation6], 0
    %23 = vsyncpa [#allocation9], 0
    %24 = vsyncpa [#allocation12], 0
    %25 = vsyncpa [#allocation15], 0
    %26 = vsyncpa [#allocation18], 0
    %27 = vsyncpa [#allocation4], 0
    // Predicated region
    $region2: #{tpu_custom_call.1} parent=1 // pred_check
      _
    $region3: #{tpu_custom_call.1} parent=1 // pred_check_branch
      %29 = sbr.rel (0) target = $region5
    $region4: #{tpu_custom_call.1} parent=1 // pred_region
      %s31 = ssub.s32 128, 128
      %32 = vsyncadd [#allocation3], %s31
      %s33 = sshll.u32 [#allocation2], 4
      %s34 = int_to_ptr.vmem [resolvable:$true] %s33
      %39 = dma.hbm_to_vmem [thread:$0]  %s0, 128, %s34, [#allocation3], 64, 64, 4
    $region5: #{tpu_custom_call.1} parent=1 // pred_fallthru
      _
    // Predicated region
    $region6: #{tpu_custom_call.1} parent=1 // pred_check
      _
    $region7: #{tpu_custom_call.1} parent=1 // pred_check_branch
      %41 = sbr.rel (0) target = $region9
    $region8: #{tpu_custom_call.1} parent=1 // pred_region
      %s43 = ssub.s32 16, 16
      %44 = vsyncadd [#allocation6], %s43
      %s46 = sshll.u32 [#allocation5], 4
      %s47 = int_to_ptr.vmem [resolvable:$true] %s46
      %49 = dma.hbm_to_vmem [thread:$0]  %s1, 16, %s47, [#allocation6]
    $region9: #{tpu_custom_call.1} parent=1 // pred_fallthru
      _
    // Predicated region
    $region10: #{tpu_custom_call.1} parent=1 // pred_check
      _
    $region11: #{tpu_custom_call.1} parent=1 // pred_check_branch
      %51 = sbr.rel (0) target = $region13
    $region12: #{tpu_custom_call.1} parent=1 // pred_region
      _
    $region13: #{tpu_custom_call.1} parent=1 // pred_fallthru
      _
    // Predicated region
    $region14: #{tpu_custom_call.1} parent=1 // pred_check
      _
    $region15: #{tpu_custom_call.1} parent=1 // pred_check_branch
      %53 = sbr.rel (0) target = $region17
    $region16: #{tpu_custom_call.1} parent=1 // pred_region
      %s55 = ssub.s32 32, 32
      %56 = vsyncadd [#allocation6], %s55
      %s58 = sshll.u32 [#allocation7], 4
      %s59 = int_to_ptr.vmem [resolvable:$true] %s58
      %61 = dma.hbm_to_vmem [thread:$0]  %s3, 32, %s59, [#allocation6]
    $region17: #{tpu_custom_call.1} parent=1 // pred_fallthru
      _
    // Predicated region
    $region18: #{tpu_custom_call.1} parent=1 // pred_check
      _
    $region19: #{tpu_custom_call.1} parent=1 // pred_check_branch
      %63 = sbr.rel (0) target = $region21
    $region20: #{tpu_custom_call.1} parent=1 // pred_region
      _
    $region21: #{tpu_custom_call.1} parent=1 // pred_fallthru
      _
    // Predicated region
    $region22: #{tpu_custom_call.1} parent=1 // pred_check
      _
    $region23: #{tpu_custom_call.1} parent=1 // pred_check_branch
      %65 = sbr.rel (0) target = $region25
    $region24: #{tpu_custom_call.1} parent=1 // pred_region
      %s67 = ssub.s32 16, 16
      %68 = vsyncadd [#allocation9], %s67
      %s70 = sshll.u32 [#allocation8], 4
      %s71 = int_to_ptr.vmem [resolvable:$true] %s70
      %73 = dma.hbm_to_vmem [thread:$0]  %s5, 16, %s71, [#allocation9]
    $region25: #{tpu_custom_call.1} parent=1 // pred_fallthru
      _
    // Predicated region
    $region26: #{tpu_custom_call.1} parent=1 // pred_check
      _
    $region27: #{tpu_custom_call.1} parent=1 // pred_check_branch
      %75 = sbr.rel (0) target = $region29
    $region28: #{tpu_custom_call.1} parent=1 // pred_region
      %s77 = ssub.s32 16, 16
      %78 = vsyncadd [#allocation9], %s77
      %s80 = sshll.u32 [#allocation10], 4
      %s81 = int_to_ptr.vmem [resolvable:$true] %s80
      %83 = dma.hbm_to_vmem [thread:$0]  %s6, 16, %s81, [#allocation9]
    $region29: #{tpu_custom_call.1} parent=1 // pred_fallthru
      _
    // Predicated region
    $region30: #{tpu_custom_call.1} parent=1 // pred_check
      _
    $region31: #{tpu_custom_call.1} parent=1 // pred_check_branch
      %85 = sbr.rel (0) target = $region33
    $region32: #{tpu_custom_call.1} parent=1 // pred_region
      %s87 = ssub.s32 16, 16
      %88 = vsyncadd [#allocation12], %s87
      %s90 = sshll.u32 [#allocation11], 4
      %s91 = int_to_ptr.vmem [resolvable:$true] %s90
      %93 = dma.hbm_to_vmem [thread:$0]  %s7, 16, %s91, [#allocation12]
    $region33: #{tpu_custom_call.1} parent=1 // pred_fallthru
      _
    // Predicated region
    $region34: #{tpu_custom_call.1} parent=1 // pred_check
      _
    $region35: #{tpu_custom_call.1} parent=1 // pred_check_branch
      %95 = sbr.rel (0) target = $region37
    $region36: #{tpu_custom_call.1} parent=1 // pred_region
      %s97 = ssub.s32 512, 512
      %98 = vsyncadd [#allocation12], %s97
      %s99 = sshll.u32 [#allocation13], 4
      %s100 = int_to_ptr.vmem [resolvable:$true] %s99
      %105 = dma.hbm_to_vmem [thread:$0]  %s8, 512, %s100, [#allocation12], 128, 128, 8
    $region37: #{tpu_custom_call.1} parent=1 // pred_fallthru
      _
    // Predicated region
    $region38: #{tpu_custom_call.1} parent=1 // pred_check
      _
    $region39: #{tpu_custom_call.1} parent=1 // pred_check_branch
      %107 = sbr.rel (0) target = $region41
    $region40: #{tpu_custom_call.1} parent=1 // pred_region
      _
    $region41: #{tpu_custom_call.1} parent=1 // pred_fallthru
      _
    // Predicated region
    $region42: #{tpu_custom_call.1} parent=1 // pred_check
      _
    $region43: #{tpu_custom_call.1} parent=1 // pred_check_branch
      %109 = sbr.rel (0) target = $region45
    $region44: #{tpu_custom_call.1} parent=1 // pred_region
      %s111 = ssub.s32 32, 32
      %112 = vsyncadd [#allocation15], %s111
      %s114 = sshll.u32 [#allocation14], 4
      %s115 = int_to_ptr.vmem [resolvable:$true] %s114
      %117 = dma.hbm_to_vmem [thread:$0]  %s10, 32, %s115, [#allocation15]
    $region45: #{tpu_custom_call.1} parent=1 // pred_fallthru
      _
    // Predicated region
    $region46: #{tpu_custom_call.1} parent=1 // pred_check
      _
    $region47: #{tpu_custom_call.1} parent=1 // pred_check_branch
      %119 = sbr.rel (0) target = $region49
    $region48: #{tpu_custom_call.1} parent=1 // pred_region
      _
    $region49: #{tpu_custom_call.1} parent=1 // pred_fallthru
      _
    // Predicated region
    $region50: #{tpu_custom_call.1} parent=1 // pred_check
      _
    $region51: #{tpu_custom_call.1} parent=1 // pred_check_branch
      %121 = sbr.rel (0) target = $region53
    $region52: #{tpu_custom_call.1} parent=1 // pred_region
      %s123 = ssub.s32 256, 256
      %124 = vsyncadd [#allocation15], %s123
      %s125 = sshll.u32 [#allocation16], 4
      %s126 = int_to_ptr.vmem [resolvable:$true] %s125
      %131 = dma.hbm_to_vmem [thread:$0]  %s12, 256, %s126, [#allocation15], 64, 64, 4
    $region53: #{tpu_custom_call.1} parent=1 // pred_fallthru
      _
    // Predicated region
    $region54: #{tpu_custom_call.1} parent=1 // pred_check
      _
    $region55: #{tpu_custom_call.1} parent=1 // pred_check_branch
      %133 = sbr.rel (0) target = $region57
    $region56: #{tpu_custom_call.1} parent=1 // pred_region
      _
    $region57: #{tpu_custom_call.1} parent=1 // pred_fallthru
      _
    // Predicated region
    $region58: #{tpu_custom_call.1} parent=1 // pred_check
      _
    $region59: #{tpu_custom_call.1} parent=1 // pred_check_branch
      %135 = sbr.rel (0) target = $region61
    $region60: #{tpu_custom_call.1} parent=1 // pred_region
      %s137 = ssub.s32 512, 512
      %138 = vsyncadd [#allocation18], %s137
      %s139 = sshll.u32 [#allocation17], 4
      %s140 = int_to_ptr.vmem [resolvable:$true] %s139
      %145 = dma.hbm_to_vmem [thread:$0]  %s14, 512, %s140, [#allocation18], 64, 64, 4
    $region61: #{tpu_custom_call.1} parent=1 // pred_fallthru
      _
    // Predicated region
    $region62: #{tpu_custom_call.1} parent=1 // pred_check
      _
    $region63: #{tpu_custom_call.1} parent=1 // pred_check_branch
      %147 = sbr.rel (0) target = $region65
    $region64: #{tpu_custom_call.1} parent=1 // pred_region
      _
    $region65: #{tpu_custom_call.1} parent=1 // pred_fallthru
      _
    // Predicated region
    $region66: #{tpu_custom_call.1} parent=1 // pred_check
      _
    $region67: #{tpu_custom_call.1} parent=1 // pred_check_branch
      %149 = sbr.rel (0) target = $region69
    $region68: #{tpu_custom_call.1} parent=1 // pred_region
      %150 = dma.done [#allocation3], 128
    $region69: #{tpu_custom_call.1} parent=1 // pred_fallthru
      _
    // Predicated region
    $region70: #{tpu_custom_call.1} parent=1 // pred_check
      _
    $region71: #{tpu_custom_call.1} parent=1 // pred_check_branch
      %152 = sbr.rel (0) target = $region73
    $region72: #{tpu_custom_call.1} parent=1 // pred_region
      %153 = dma.done [#allocation6], 16
    $region73: #{tpu_custom_call.1} parent=1 // pred_fallthru
      _
    // Predicated region
    $region74: #{tpu_custom_call.1} parent=1 // pred_check
      _
    $region75: #{tpu_custom_call.1} parent=1 // pred_check_branch
      %155 = sbr.rel (0) target = $region77
    $region76: #{tpu_custom_call.1} parent=1 // pred_region
      %156 = dma.done [#allocation6], 32
    $region77: #{tpu_custom_call.1} parent=1 // pred_fallthru
      _
    // Predicated region
    $region78: #{tpu_custom_call.1} parent=1 // pred_check
      _
    $region79: #{tpu_custom_call.1} parent=1 // pred_check_branch
      %158 = sbr.rel (0) target = $region81
    $region80: #{tpu_custom_call.1} parent=1 // pred_region
      %159 = dma.done [#allocation9], 16
    $region81: #{tpu_custom_call.1} parent=1 // pred_fallthru
      _
    // Predicated region
    $region82: #{tpu_custom_call.1} parent=1 // pred_check
      _
    $region83: #{tpu_custom_call.1} parent=1 // pred_check_branch
      %161 = sbr.rel (0) target = $region85
    $region84: #{tpu_custom_call.1} parent=1 // pred_region
      %162 = dma.done [#allocation9], 16
    $region85: #{tpu_custom_call.1} parent=1 // pred_fallthru
      _
    // Predicated region
    $region86: #{tpu_custom_call.1} parent=1 // pred_check
      _
    $region87: #{tpu_custom_call.1} parent=1 // pred_check_branch
      %164 = sbr.rel (0) target = $region89
    $region88: #{tpu_custom_call.1} parent=1 // pred_region
      %165 = dma.done [#allocation12], 16
    $region89: #{tpu_custom_call.1} parent=1 // pred_fallthru
      _
    // Predicated region
    $region90: #{tpu_custom_call.1} parent=1 // pred_check
      _
    $region91: #{tpu_custom_call.1} parent=1 // pred_check_branch
      %167 = sbr.rel (0) target = $region93
    $region92: #{tpu_custom_call.1} parent=1 // pred_region
      %168 = dma.done [#allocation12], 512
    $region93: #{tpu_custom_call.1} parent=1 // pred_fallthru
      _
    // Predicated region
    $region94: #{tpu_custom_call.1} parent=1 // pred_check
      _
    $region95: #{tpu_custom_call.1} parent=1 // pred_check_branch
      %170 = sbr.rel (0) target = $region97
    $region96: #{tpu_custom_call.1} parent=1 // pred_region
      %171 = dma.done [#allocation15], 32
    $region97: #{tpu_custom_call.1} parent=1 // pred_fallthru
      _
    // Predicated region
    $region98: #{tpu_custom_call.1} parent=1 // pred_check
      _
    $region99: #{tpu_custom_call.1} parent=1 // pred_check_branch
      %173 = sbr.rel (0) target = $region101
    $region100: #{tpu_custom_call.1} parent=1 // pred_region
      %174 = dma.done [#allocation15], 256
    $region101: #{tpu_custom_call.1} parent=1 // pred_fallthru
      _
    // Predicated region
    $region102: #{tpu_custom_call.1} parent=1 // pred_check
      _
    $region103: #{tpu_custom_call.1} parent=1 // pred_check_branch
      %176 = sbr.rel (0) target = $region105
    $region104: #{tpu_custom_call.1} parent=1 // pred_region
      %177 = dma.done [#allocation18], 512
    $region105: #{tpu_custom_call.1} parent=1 // pred_fallthru
      _
    %v179 = vld [vmem:[#allocation2] sm:$0xf]
    %v180 = vld [vmem:[#allocation2 + $0x4] sm:$0xf]
    %v181 = vld [vmem:[%s4] sm:$0xf]
    %v182 = vld [vmem:[%s4 + $0x4] sm:$0xf]
    %v183 = vld [vmem:[%s4 + $0x8] sm:$0xf]
    %v184 = vld [vmem:[%s4 + $0xc] sm:$0xf]
    %v185 = vld [vmem:[%s4 + $0x10] sm:$0xf]
    %v186 = vld [vmem:[%s4 + $0x14] sm:$0xf]
    %v187 = vld [vmem:[%s4 + $0x18] sm:$0xf]
    %v188 = vld [vmem:[%s4 + $0x1c] sm:$0xf]
    %v189 = vld [vmem:[%s4 + $0x20] sm:$0xf]
    %v190 = vld [vmem:[%s4 + $0x24] sm:$0xf]
    %v191 = vld [vmem:[%s4 + $0x28] sm:$0x1]
    %v192 = vld [vmem:[#allocation8] sm:$0x1]
    %v194 = vlaneseq
    %v195 = vshrl.u32 %v194, 7
    %v196 = vsub.s32 0, %v195
    %v197 = vrot.slane %v192, %v196
    %v201 = vunpack.c.l.b16 %v179
    %v202 = vunpack.c.l.b16 %v180
    %v203 = vpack.c.b16 %v202, %v201
    %v215 = vunpack.c.l.b16 %v181
    %v216 = vunpack.c.l.b16 %v182
    %v217 = vunpack.c.l.b16 %v183
    %v218 = vunpack.c.l.b16 %v184
    %v219 = vunpack.c.l.b16 %v185
    %v220 = vunpack.c.l.b16 %v186
    %v221 = vunpack.c.l.b16 %v187
    %v222 = vunpack.c.l.b16 %v188
    %v223 = vunpack.c.l.b16 %v189
    %v224 = vunpack.c.l.b16 %v190
    %v225 = vunpack.c.l.b16 %v191
    %v226 = vpack.c.b16 %v216, %v215
    %v227 = vpack.c.b16 %v218, %v217
    %v228 = vpack.c.b16 %v220, %v219
    %v229 = vpack.c.b16 %v222, %v221
    %v230 = vpack.c.b16 %v224, %v223
    %v231 = vpack.c.b16 %v225, %v225
    %vm237 = vcmask 662528
    %v239 = vsel %vm237, %v203, 0
    %vm241 = vcmask 1040384
    %v242 = vsel 0, 4294967295, 65535
    %v243 = vsel %vm241, %v242, 0
    %v245 = vand.u32 %v231, %v243
    %247 = vmatprep.subr.bf16.mxu0 0
    %248 = vmatpush1.bf16.msra.mxu0 0
    %249 = vmatprep.subr.bf16.mxu0 0
    %250 = vmatpush1.bf16.msra.mxu0 0
    %251 = vmatprep.subr.bf16.mxu0 0
    %252 = vmatpush1.bf16.msra.mxu0 %v245
    %253 = vmatprep.subr.bf16.mxu0 0
    %254 = vmatpush1.bf16.msra.mxu0 %v230
    %255 = vmatprep.subr.bf16.mxu0 0
    %256 = vmatpush1.bf16.msra.mxu0 %v229
    %257 = vmatprep.subr.bf16.mxu0 0
    %258 = vmatpush1.bf16.msra.mxu0 %v228
    %259 = vmatprep.subr.bf16.mxu0 0
    %260 = vmatpush1.bf16.msra.mxu0 %v227
    %261 = vmatprep.subr.bf16.mxu0 0
    %262 = vmatpush1.bf16.msra.mxu0 %v226
    %263 = vmatprep.subr.bf16.mxu0 0
    %264 = vmatpush2.bf16.msra.mxu0 0
    %265 = vmatprep.subr.bf16.mxu0 0
    %266 = vmatpush2.bf16.msra.mxu0 0
    %267 = vmatprep.subr.bf16.mxu0 0
    %268 = vmatpush2.bf16.msra.mxu0 0
    %269 = vmatprep.subr.bf16.mxu0 0
    %270 = vmatpush2.bf16.msra.mxu0 0
    %271 = vmatprep.subr.bf16.mxu0 0
    %272 = vmatpush2.bf16.msra.mxu0 0
    %273 = vmatprep.subr.bf16.mxu0 0
    %274 = vmatpush2.bf16.msra.mxu0 0
    %275 = vmatprep.subr.bf16.mxu0 0
    %276 = vmatpush2.bf16.msra.mxu0 0
    %277 = vmatprep.subr.bf16.mxu0 0
    %278 = vmatpush2.bf16.msra.mxu0 0
    %279 = vmatprep.mubr.bf16.mxu0 0
    %280 = vmatmul.mubr.bf16.gmra.mxu0 %v239
    %v281 = vpop.f32.mrf.mxu0
    %v282 = vadd.f32 %v197, %v281
    %v283 = vpop.f32.mrf.mxu0
    %v284 = vpop.f32.mrf.mxu0
    %v285 = vadd.f32 %v197, %v284
    %v286 = vpop.f32.mrf.mxu0
    %287 = vdwg.mxu0
    %vm288 = vcmask 261120
    %v289 = vsel %vm288, %v282, 0.0
    %v290 = vsel %vm288, %v285, 0.0
    %v291 = vadd.f32 %v289, %v290
    %v292 = vrot.slane %v291, 4
    %v293 = vadd.f32 %v291, %v292
    %v294 = vrot.slane %v293, 2
    %v295 = vadd.f32 %v293, %v294
    %v296 = vrot.slane %v295, 1
    %v297 = vadd.f32 %v295, %v296
    %v298 = vrcp.pop 16.0
    %v299 = vmul.f32 %v297, %v298
    %v300 = vsub.f32 %v282, %v299
    %v301 = vsub.f32 %v285, %v299
    %v302 = vmul.f32 %v300, %v300
    %v303 = vmul.f32 %v301, %v301
    %v304 = vsel %vm288, %v302, 0.0
    %v305 = vsel %vm288, %v303, 0.0
    %v306 = vadd.f32 %v304, %v305
    %v307 = vrot.slane %v306, 4
    %v308 = vadd.f32 %v306, %v307
    %v309 = vrot.slane %v308, 2
    %v310 = vadd.f32 %v308, %v309
    %v311 = vrot.slane %v310, 1
    %v312 = vadd.f32 %v310, %v311
    %v313 = vmul.f32 %v312, %v298
    %v314 = vadd.f32 %v313, 1e-05
    %v315 = vrsqrt.pop %v314
    %v316 = vmul.f32 %v300, %v315
    %v317 = vmul.f32 %v301, %v315
    %v318 = vld [vmem:[#allocation10] sm:$0x1]
    %v320 = vlaneseq
    %v321 = vshrl.u32 %v320, 7
    %v322 = vsub.s32 0, %v321
    %v323 = vrot.slane %v318, %v322
    %v325 = vmul.f32 %v316, %v323
    %v326 = vmul.f32 %v317, %v323
    %v327 = vld [vmem:[#allocation11] sm:$0x1]
    %v329 = vlaneseq
    %v330 = vshrl.u32 %v329, 7
    %v331 = vsub.s32 0, %v330
    %v332 = vrot.slane %v327, %v331
    %v334 = vadd.f32 %v325, %v332
    %v335 = vadd.f32 %v326, %v332
    %v336 = vmax.f32 %v334, 0.0
    %v337 = vmax.f32 %v335, 0.0
    %v338 = vpack.c.bf16 %v337, %v336
    %v339 = vld [vmem:[#allocation13] sm:$0xff]
    %v340 = vld [vmem:[#allocation13 + $0x8] sm:$0xff]
    %v341 = vld [vmem:[#allocation13 + $0x10] sm:$0xff]
    %v342 = vld [vmem:[#allocation13 + $0x18] sm:$0xff]
    %v343 = vld [vmem:[#allocation14] sm:$0x3]
    %v345 = vlaneseq
    %v346 = vshrl.u32 %v345, 7
    %v347 = vsub.s32 0, %v346
    %v348 = vrot.slane %v343, %v347
    %v349 = vlaneseq
    %v350 = vshrl.u32 %v349, 7
    %v351 = vsub.s32 1, %v350
    %v352 = vrot.slane %v343, %v351
    %v359 = vunpack.c.l.b16 %v339
    %v360 = vunpack.c.h.b16 %v339
    %v361 = vunpack.c.l.b16 %v340
    %v362 = vunpack.c.h.b16 %v340
    %v363 = vunpack.c.l.b16 %v341
    %v364 = vunpack.c.h.b16 %v341
    %v365 = vunpack.c.l.b16 %v342
    %v366 = vunpack.c.h.b16 %v342
    %v367 = vpack.c.b16 %v361, %v359
    %v368 = vpack.c.b16 %v362, %v360
    %v369 = vpack.c.b16 %v365, %v363
    %v370 = vpack.c.b16 %v366, %v364
    %v376 = vsel %vm288, %v338, 0
    %378 = vmatprep.subr.bf16.mxu0 0
    %379 = vmatpush1.bf16.msra.mxu0 0
    %380 = vmatprep.subr.bf16.mxu0 0
    %381 = vmatpush1.bf16.msra.mxu0 0
    %382 = vmatprep.subr.bf16.mxu0 0
    %383 = vmatpush1.bf16.msra.mxu0 0
    %384 = vmatprep.subr.bf16.mxu0 0
    %385 = vmatpush1.bf16.msra.mxu0 0
    %386 = vmatprep.subr.bf16.mxu0 0
    %387 = vmatpush1.bf16.msra.mxu0 0
    %388 = vmatprep.subr.bf16.mxu0 0
    %389 = vmatpush1.bf16.msra.mxu0 0
    %390 = vmatprep.subr.bf16.mxu0 %v370
    %391 = vmatpush1.bf16.msra.mxu0 %v369
    %392 = vmatprep.subr.bf16.mxu0 %v368
    %393 = vmatpush1.bf16.msra.mxu0 %v367
    %394 = vmatprep.subr.bf16.mxu0 0
    %395 = vmatpush2.bf16.msra.mxu0 0
    %396 = vmatprep.subr.bf16.mxu0 0
    %397 = vmatpush2.bf16.msra.mxu0 0
    %398 = vmatprep.subr.bf16.mxu0 0
    %399 = vmatpush2.bf16.msra.mxu0 0
    %400 = vmatprep.subr.bf16.mxu0 0
    %401 = vmatpush2.bf16.msra.mxu0 0
    %402 = vmatprep.subr.bf16.mxu0 0
    %403 = vmatpush2.bf16.msra.mxu0 0
    %404 = vmatprep.subr.bf16.mxu0 0
    %405 = vmatpush2.bf16.msra.mxu0 0
    %406 = vmatprep.subr.bf16.mxu0 0
    %407 = vmatpush2.bf16.msra.mxu0 0
    %408 = vmatprep.subr.bf16.mxu0 0
    %409 = vmatpush2.bf16.msra.mxu0 0
    %410 = vmatprep.mubr.bf16.mxu0 0
    %411 = vmatmul.mubr.bf16.gmra.mxu0 %v376
    %v412 = vpop.f32.mrf.mxu0
    %v413 = vadd.f32 %v348, %v412
    %v414 = vpop.f32.mrf.mxu0
    %v415 = vadd.f32 %v352, %v414
    %v416 = vpop.f32.mrf.mxu0
    %v417 = vadd.f32 %v348, %v416
    %v418 = vpop.f32.mrf.mxu0
    %v419 = vadd.f32 %v352, %v418
    %420 = vdwg.mxu0
    %v425 = vcombine.low %v413, %v415
    %v426 = vcombine.high %v413, %v415
    %v428 = vunpack.c.l.s4 1983009808
    %v429 = vunpack.c.0.s8 %v428
    %v430 = vlaneseq
    %v431 = vshrl.u32 %v430, 7
    %v432 = vsub.s32 %v429, %v431
    %v433 = vrot.slane %v425, %v432
    %v435 = vunpack.c.l.s4 1983009808
    %v436 = vunpack.c.0.s8 %v435
    %v437 = vlaneseq
    %v438 = vshrl.u32 %v437, 7
    %v439 = vsub.s32 %v436, %v438
    %v440 = vrot.slane %v426, %v439
    %v441 = vcombine.high %v433, %v433
    %v442 = vcombine.high %v440, %v440
    %v443 = vcombine.low %v417, %v419
    %v444 = vcombine.high %v417, %v419
    %v446 = vunpack.c.l.s4 1983009808
    %v447 = vunpack.c.0.s8 %v446
    %v448 = vlaneseq
    %v449 = vshrl.u32 %v448, 7
    %v450 = vsub.s32 %v447, %v449
    %v451 = vrot.slane %v443, %v450
    %v453 = vunpack.c.l.s4 1983009808
    %v454 = vunpack.c.0.s8 %v453
    %v455 = vlaneseq
    %v456 = vshrl.u32 %v455, 7
    %v457 = vsub.s32 %v454, %v456
    %v458 = vrot.slane %v444, %v457
    %v459 = vcombine.high %v451, %v451
    %v460 = vcombine.high %v458, %v458
    %v469 = vld [vmem:[%s2] sm:$0x3]
    %v470 = vld [vmem:[%s2 + $0x2] sm:$0x3]
    %v471 = vld [vmem:[%s2 + $0x4] sm:$0x3]
    %v472 = vld [vmem:[%s2 + $0x6] sm:$0x3]
    %v473 = vld [vmem:[%s2 + $0x8] sm:$0x3]
    %v474 = vld [vmem:[%s2 + $0xa] sm:$0x3]
    %v475 = vld [vmem:[%s2 + $0xc] sm:$0x3]
    %v476 = vld [vmem:[%s2 + $0xe] sm:$0x3]
    %v477 = vld [vmem:[%s9] sm:$0xff]
    %v478 = vld [vmem:[%s9 + $0x8] sm:$0xff]
    %v479 = vld [vmem:[%s9 + $0x10] sm:$0xff]
    %v480 = vld [vmem:[%s9 + $0x18] sm:$0xff]
    %v481 = vld [vmem:[%s9 + $0x20] sm:$0xff]
    %v482 = vld [vmem:[%s9 + $0x28] sm:$0xff]
    %v483 = vld [vmem:[%s9 + $0x30] sm:$0xff]
    %v484 = vld [vmem:[%s9 + $0x38] sm:$0xff]
    %v493 = vunpack.c.l.b16 %v477
    %v494 = vunpack.c.h.b16 %v477
    %v495 = vunpack.c.l.b16 %v478
    %v496 = vunpack.c.h.b16 %v478
    %v497 = vunpack.c.l.b16 %v479
    %v498 = vunpack.c.h.b16 %v479
    %v499 = vunpack.c.l.b16 %v480
    %v500 = vunpack.c.h.b16 %v480
    %v501 = vunpack.c.l.b16 %v481
    %v502 = vunpack.c.h.b16 %v481
    %v503 = vunpack.c.l.b16 %v482
    %v504 = vunpack.c.h.b16 %v482
    %v505 = vunpack.c.l.b16 %v483
    %v506 = vunpack.c.h.b16 %v483
    %v507 = vunpack.c.l.b16 %v484
    %v508 = vunpack.c.h.b16 %v484
    %v509 = vpack.c.b16 %v495, %v493
    %v510 = vpack.c.b16 %v496, %v494
    %v511 = vpack.c.b16 %v499, %v497
    %v512 = vpack.c.b16 %v500, %v498
    %v513 = vpack.c.b16 %v503, %v501
    %v514 = vpack.c.b16 %v504, %v502
    %v515 = vpack.c.b16 %v507, %v505
    %v516 = vpack.c.b16 %v508, %v506
    %vm525 = vcmask 523264
    %v527 = vsel %vm525, 0, 0
    %529 = vmatprep.subr.bf16.mxu0 0
    %530 = vmatpush1.bf16.msra.mxu0 0
    %531 = vmatprep.subr.bf16.mxu0 0
    %532 = vmatpush1.bf16.msra.mxu0 0
    %533 = vmatprep.subr.bf16.mxu0 0
    %534 = vmatpush1.bf16.msra.mxu0 0
    %535 = vmatprep.subr.bf16.mxu0 0
    %536 = vmatpush1.bf16.msra.mxu0 0
    %537 = vmatprep.subr.bf16.mxu0 %v516
    %538 = vmatpush1.bf16.msra.mxu0 %v515
    %539 = vmatprep.subr.bf16.mxu0 %v514
    %540 = vmatpush1.bf16.msra.mxu0 %v513
    %541 = vmatprep.subr.bf16.mxu0 %v512
    %542 = vmatpush1.bf16.msra.mxu0 %v511
    %543 = vmatprep.subr.bf16.mxu0 %v510
    %544 = vmatpush1.bf16.msra.mxu0 %v509
    %545 = vmatprep.subr.bf16.mxu0 0
    %546 = vmatpush2.bf16.msra.mxu0 0
    %547 = vmatprep.subr.bf16.mxu0 0
    %548 = vmatpush2.bf16.msra.mxu0 0
    %549 = vmatprep.subr.bf16.mxu0 0
    %550 = vmatpush2.bf16.msra.mxu0 0
    %551 = vmatprep.subr.bf16.mxu0 0
    %552 = vmatpush2.bf16.msra.mxu0 0
    %553 = vmatprep.subr.bf16.mxu0 0
    %554 = vmatpush2.bf16.msra.mxu0 0
    %555 = vmatprep.subr.bf16.mxu0 0
    %556 = vmatpush2.bf16.msra.mxu0 0
    %557 = vmatprep.subr.bf16.mxu0 0
    %558 = vmatpush2.bf16.msra.mxu0 0
    %559 = vmatprep.subr.bf16.mxu0 0
    %560 = vmatpush2.bf16.msra.mxu0 0
    %561 = vmatprep.mubr.bf16.mxu0 0
    %562 = vmatmul.mubr.bf16.gmra.mxu0 %v527
    %v563 = vpop.f32.mrf.mxu0
    %v564 = vadd.f32 0.0, %v563
    %v565 = vpop.f32.mrf.mxu0
    %v566 = vadd.f32 0.0, %v565
    %v567 = vpop.f32.mrf.mxu0
    %v568 = vpop.f32.mrf.mxu0
    %569 = vdwg.mxu0
    %v572 = vcombine.low %v564, %v566
    %v574 = vunpack.c.l.s4 1983009808
    %v575 = vunpack.c.0.s8 %v574
    %v576 = vlaneseq
    %v577 = vshrl.u32 %v576, 7
    %v578 = vsub.s32 %v575, %v577
    %v579 = vrot.slane %v572, %v578
    %v581 = vadd.f32 %v433, %v579
    %v582 = vxor.u32 %v581, 2147483648
    %v583 = vmul.f32 %v582, 1.442695
    %v584 = vpow.pop %v583
    %v585 = vadd.f32 %v584, 1.0
    %v586 = vrcp.pop %v585
    %v587 = vmul.f32 1.0, %v586
    %v589 = vrot.slane %v581, 2
    %v591 = vtanh.pop %v589
    %592 = vrot.lane.b32.xlu0 %v581, 64
    %v593 = vpop.permute.xlu0 %592
    %v594 = vrot.slane %v593, 2
    %v596 = vxor.u32 %v594, 2147483648
    %v597 = vmul.f32 %v596, 1.442695
    %v598 = vpow.pop %v597
    %v599 = vadd.f32 %v598, 1.0
    %v600 = vrcp.pop %v599
    %v601 = vmul.f32 1.0, %v600
    %v602 = vmul.f32 %v587, 0.0
    %v603 = vmul.f32 %v587, %v591
    %605 = vrot.lane.b32.xlu0 %v603, 64
    %v606 = vpop.permute.xlu0 %605
    %v608 = vadd.f32 %v602, %v606
    %v609 = vtanh.pop %v608
    %611 = vrot.lane.b32.xlu0 %v609, 64
    %v612 = vpop.permute.xlu0 %611
    %v614 = vmul.f32 %v601, %v612
    %616 = vset.pattern.permute.xlu0 0
    %617 = vperm.xlu0 %616, %v469
    %v618 = vpop.permute.xlu0 %617
    %v620 = vmul.f32 %v618, %v614
    %v621 = vadd.f32 %v620, 0.0
    %v622 = vpack.c.bf16 %v614, %v614
    %v624 = vsel %vm525, %v622, 0
    %626 = vmatprep.subr.bf16.mxu0 0
    %627 = vmatpush1.bf16.msra.mxu0 0
    %628 = vmatprep.subr.bf16.mxu0 0
    %629 = vmatpush1.bf16.msra.mxu0 0
    %630 = vmatprep.subr.bf16.mxu0 0
    %631 = vmatpush1.bf16.msra.mxu0 0
    %632 = vmatprep.subr.bf16.mxu0 0
    %633 = vmatpush1.bf16.msra.mxu0 0
    %634 = vmatprep.subr.bf16.mxu0 %v516
    %635 = vmatpush1.bf16.msra.mxu0 %v515
    %636 = vmatprep.subr.bf16.mxu0 %v514
    %637 = vmatpush1.bf16.msra.mxu0 %v513
    %638 = vmatprep.subr.bf16.mxu0 %v512
    %639 = vmatpush1.bf16.msra.mxu0 %v511
    %640 = vmatprep.subr.bf16.mxu0 %v510
    %641 = vmatpush1.bf16.msra.mxu0 %v509
    %642 = vmatprep.subr.bf16.mxu0 0
    %643 = vmatpush2.bf16.msra.mxu0 0
    %644 = vmatprep.subr.bf16.mxu0 0
    %645 = vmatpush2.bf16.msra.mxu0 0
    %646 = vmatprep.subr.bf16.mxu0 0
    %647 = vmatpush2.bf16.msra.mxu0 0
    %648 = vmatprep.subr.bf16.mxu0 0
    %649 = vmatpush2.bf16.msra.mxu0 0
    %650 = vmatprep.subr.bf16.mxu0 0
    %651 = vmatpush2.bf16.msra.mxu0 0
    %652 = vmatprep.subr.bf16.mxu0 0
    %653 = vmatpush2.bf16.msra.mxu0 0
    %654 = vmatprep.subr.bf16.mxu0 0
    %655 = vmatpush2.bf16.msra.mxu0 0
    %656 = vmatprep.subr.bf16.mxu0 0
    %657 = vmatpush2.bf16.msra.mxu0 0
    %658 = vmatprep.mubr.bf16.mxu0 0
    %659 = vmatmul.mubr.bf16.gmra.mxu0 %v624
    %v660 = vpop.f32.mrf.mxu0
    %v661 = vadd.f32 0.0, %v660
    %v662 = vpop.f32.mrf.mxu0
    %v663 = vadd.f32 0.0, %v662
    %v664 = vpop.f32.mrf.mxu0
    %v665 = vpop.f32.mrf.mxu0
    %666 = vdwg.mxu0
    %v669 = vcombine.low %v661, %v663
    %v671 = vunpack.c.l.s4 1983009808
    %v672 = vunpack.c.0.s8 %v671
    %v673 = vlaneseq
    %v674 = vshrl.u32 %v673, 7
    %v675 = vsub.s32 %v672, %v674
    %v676 = vrot.slane %v669, %v675
    %v678 = vadd.f32 %v441, %v676
    %v679 = vxor.u32 %v678, 2147483648
    %v680 = vmul.f32 %v679, 1.442695
    %v681 = vpow.pop %v680
    %v682 = vadd.f32 %v681, 1.0
    %v683 = vrcp.pop %v682
    %v684 = vmul.f32 1.0, %v683
    %v686 = vrot.slane %v678, 2
    %v688 = vtanh.pop %v686
    %689 = vrot.lane.b32.xlu0 %v678, 64
    %v690 = vpop.permute.xlu0 %689
    %v691 = vrot.slane %v690, 2
    %v693 = vxor.u32 %v691, 2147483648
    %v694 = vmul.f32 %v693, 1.442695
    %v695 = vpow.pop %v694
    %v696 = vadd.f32 %v695, 1.0
    %v697 = vrcp.pop %v696
    %v698 = vmul.f32 1.0, %v697
    %v699 = vmul.f32 %v684, %v608
    %v700 = vmul.f32 %v684, %v688
    %702 = vrot.lane.b32.xlu0 %v700, 64
    %v703 = vpop.permute.xlu0 %702
    %v705 = vadd.f32 %v699, %v703
    %v706 = vtanh.pop %v705
    %708 = vrot.lane.b32.xlu0 %v706, 64
    %v709 = vpop.permute.xlu0 %708
    %v711 = vmul.f32 %v698, %v709
    %713 = vset.pattern.permute.xlu0 0
    %714 = vperm.xlu0 %713, %v470
    %v715 = vpop.permute.xlu0 %714
    %v717 = vmul.f32 %v715, %v711
    %v718 = vadd.f32 %v621, %v717
    %v719 = vpack.c.bf16 %v711, %v711
    %v721 = vsel %vm525, %v719, 0
    %723 = vmatprep.subr.bf16.mxu0 0
    %724 = vmatpush1.bf16.msra.mxu0 0
    %725 = vmatprep.subr.bf16.mxu0 0
    %726 = vmatpush1.bf16.msra.mxu0 0
    %727 = vmatprep.subr.bf16.mxu0 0
    %728 = vmatpush1.bf16.msra.mxu0 0
    %729 = vmatprep.subr.bf16.mxu0 0
    %730 = vmatpush1.bf16.msra.mxu0 0
    %731 = vmatprep.subr.bf16.mxu0 %v516
    %732 = vmatpush1.bf16.msra.mxu0 %v515
    %733 = vmatprep.subr.bf16.mxu0 %v514
    %734 = vmatpush1.bf16.msra.mxu0 %v513
    %735 = vmatprep.subr.bf16.mxu0 %v512
    %736 = vmatpush1.bf16.msra.mxu0 %v511
    %737 = vmatprep.subr.bf16.mxu0 %v510
    %738 = vmatpush1.bf16.msra.mxu0 %v509
    %739 = vmatprep.subr.bf16.mxu0 0
    %740 = vmatpush2.bf16.msra.mxu0 0
    %741 = vmatprep.subr.bf16.mxu0 0
    %742 = vmatpush2.bf16.msra.mxu0 0
    %743 = vmatprep.subr.bf16.mxu0 0
    %744 = vmatpush2.bf16.msra.mxu0 0
    %745 = vmatprep.subr.bf16.mxu0 0
    %746 = vmatpush2.bf16.msra.mxu0 0
    %747 = vmatprep.subr.bf16.mxu0 0
    %748 = vmatpush2.bf16.msra.mxu0 0
    %749 = vmatprep.subr.bf16.mxu0 0
    %750 = vmatpush2.bf16.msra.mxu0 0
    %751 = vmatprep.subr.bf16.mxu0 0
    %752 = vmatpush2.bf16.msra.mxu0 0
    %753 = vmatprep.subr.bf16.mxu0 0
    %754 = vmatpush2.bf16.msra.mxu0 0
    %755 = vmatprep.mubr.bf16.mxu0 0
    %756 = vmatmul.mubr.bf16.gmra.mxu0 %v721
    %v757 = vpop.f32.mrf.mxu0
    %v758 = vadd.f32 0.0, %v757
    %v759 = vpop.f32.mrf.mxu0
    %v760 = vadd.f32 0.0, %v759
    %v761 = vpop.f32.mrf.mxu0
    %v762 = vpop.f32.mrf.mxu0
    %763 = vdwg.mxu0
    %v766 = vcombine.low %v758, %v760
    %v768 = vunpack.c.l.s4 1983009808
    %v769 = vunpack.c.0.s8 %v768
    %v770 = vlaneseq
    %v771 = vshrl.u32 %v770, 7
    %v772 = vsub.s32 %v769, %v771
    %v773 = vrot.slane %v766, %v772
    %v775 = vadd.f32 %v440, %v773
    %v776 = vxor.u32 %v775, 2147483648
    %v777 = vmul.f32 %v776, 1.442695
    %v778 = vpow.pop %v777
    %v779 = vadd.f32 %v778, 1.0
    %v780 = vrcp.pop %v779
    %v781 = vmul.f32 1.0, %v780
    %v783 = vrot.slane %v775, 2
    %v785 = vtanh.pop %v783
    %786 = vrot.lane.b32.xlu0 %v775, 64
    %v787 = vpop.permute.xlu0 %786
    %v788 = vrot.slane %v787, 2
    %v790 = vxor.u32 %v788, 2147483648
    %v791 = vmul.f32 %v790, 1.442695
    %v792 = vpow.pop %v791
    %v793 = vadd.f32 %v792, 1.0
    %v794 = vrcp.pop %v793
    %v795 = vmul.f32 1.0, %v794
    %v796 = vmul.f32 %v781, %v705
    %v797 = vmul.f32 %v781, %v785
    %799 = vrot.lane.b32.xlu0 %v797, 64
    %v800 = vpop.permute.xlu0 %799
    %v802 = vadd.f32 %v796, %v800
    %v803 = vtanh.pop %v802
    %805 = vrot.lane.b32.xlu0 %v803, 64
    %v806 = vpop.permute.xlu0 %805
    %v808 = vmul.f32 %v795, %v806
    %810 = vset.pattern.permute.xlu0 0
    %811 = vperm.xlu0 %810, %v471
    %v812 = vpop.permute.xlu0 %811
    %v814 = vmul.f32 %v812, %v808
    %v815 = vadd.f32 %v718, %v814
    %v816 = vpack.c.bf16 %v808, %v808
    %v818 = vsel %vm525, %v816, 0
    %820 = vmatprep.subr.bf16.mxu0 0
    %821 = vmatpush1.bf16.msra.mxu0 0
    %822 = vmatprep.subr.bf16.mxu0 0
    %823 = vmatpush1.bf16.msra.mxu0 0
    %824 = vmatprep.subr.bf16.mxu0 0
    %825 = vmatpush1.bf16.msra.mxu0 0
    %826 = vmatprep.subr.bf16.mxu0 0
    %827 = vmatpush1.bf16.msra.mxu0 0
    %828 = vmatprep.subr.bf16.mxu0 %v516
    %829 = vmatpush1.bf16.msra.mxu0 %v515
    %830 = vmatprep.subr.bf16.mxu0 %v514
    %831 = vmatpush1.bf16.msra.mxu0 %v513
    %832 = vmatprep.subr.bf16.mxu0 %v512
    %833 = vmatpush1.bf16.msra.mxu0 %v511
    %834 = vmatprep.subr.bf16.mxu0 %v510
    %835 = vmatpush1.bf16.msra.mxu0 %v509
    %836 = vmatprep.subr.bf16.mxu0 0
    %837 = vmatpush2.bf16.msra.mxu0 0
    %838 = vmatprep.subr.bf16.mxu0 0
    %839 = vmatpush2.bf16.msra.mxu0 0
    %840 = vmatprep.subr.bf16.mxu0 0
    %841 = vmatpush2.bf16.msra.mxu0 0
    %842 = vmatprep.subr.bf16.mxu0 0
    %843 = vmatpush2.bf16.msra.mxu0 0
    %844 = vmatprep.subr.bf16.mxu0 0
    %845 = vmatpush2.bf16.msra.mxu0 0
    %846 = vmatprep.subr.bf16.mxu0 0
    %847 = vmatpush2.bf16.msra.mxu0 0
    %848 = vmatprep.subr.bf16.mxu0 0
    %849 = vmatpush2.bf16.msra.mxu0 0
    %850 = vmatprep.subr.bf16.mxu0 0
    %851 = vmatpush2.bf16.msra.mxu0 0
    %852 = vmatprep.mubr.bf16.mxu0 0
    %853 = vmatmul.mubr.bf16.gmra.mxu0 %v818
    %v854 = vpop.f32.mrf.mxu0
    %v855 = vadd.f32 0.0, %v854
    %v856 = vpop.f32.mrf.mxu0
    %v857 = vadd.f32 0.0, %v856
    %v858 = vpop.f32.mrf.mxu0
    %v859 = vpop.f32.mrf.mxu0
    %860 = vdwg.mxu0
    %v863 = vcombine.low %v855, %v857
    %v865 = vunpack.c.l.s4 1983009808
    %v866 = vunpack.c.0.s8 %v865
    %v867 = vlaneseq
    %v868 = vshrl.u32 %v867, 7
    %v869 = vsub.s32 %v866, %v868
    %v870 = vrot.slane %v863, %v869
    %v872 = vadd.f32 %v442, %v870
    %v873 = vxor.u32 %v872, 2147483648
    %v874 = vmul.f32 %v873, 1.442695
    %v875 = vpow.pop %v874
    %v876 = vadd.f32 %v875, 1.0
    %v877 = vrcp.pop %v876
    %v878 = vmul.f32 1.0, %v877
    %v880 = vrot.slane %v872, 2
    %v882 = vtanh.pop %v880
    %883 = vrot.lane.b32.xlu0 %v872, 64
    %v884 = vpop.permute.xlu0 %883
    %v885 = vrot.slane %v884, 2
    %v887 = vxor.u32 %v885, 2147483648
    %v888 = vmul.f32 %v887, 1.442695
    %v889 = vpow.pop %v888
    %v890 = vadd.f32 %v889, 1.0
    %v891 = vrcp.pop %v890
    %v892 = vmul.f32 1.0, %v891
    %v893 = vmul.f32 %v878, %v802
    %v894 = vmul.f32 %v878, %v882
    %896 = vrot.lane.b32.xlu0 %v894, 64
    %v897 = vpop.permute.xlu0 %896
    %v899 = vadd.f32 %v893, %v897
    %v900 = vtanh.pop %v899
    %902 = vrot.lane.b32.xlu0 %v900, 64
    %v903 = vpop.permute.xlu0 %902
    %v905 = vmul.f32 %v892, %v903
    %907 = vset.pattern.permute.xlu0 0
    %908 = vperm.xlu0 %907, %v472
    %v909 = vpop.permute.xlu0 %908
    %v911 = vmul.f32 %v909, %v905
    %v912 = vadd.f32 %v815, %v911
    %v913 = vpack.c.bf16 %v905, %v905
    %v915 = vsel %vm525, %v913, 0
    %917 = vmatprep.subr.bf16.mxu0 0
    %918 = vmatpush1.bf16.msra.mxu0 0
    %919 = vmatprep.subr.bf16.mxu0 0
    %920 = vmatpush1.bf16.msra.mxu0 0
    %921 = vmatprep.subr.bf16.mxu0 0
    %922 = vmatpush1.bf16.msra.mxu0 0
    %923 = vmatprep.subr.bf16.mxu0 0
    %924 = vmatpush1.bf16.msra.mxu0 0
    %925 = vmatprep.subr.bf16.mxu0 %v516
    %926 = vmatpush1.bf16.msra.mxu0 %v515
    %927 = vmatprep.subr.bf16.mxu0 %v514
    %928 = vmatpush1.bf16.msra.mxu0 %v513
    %929 = vmatprep.subr.bf16.mxu0 %v512
    %930 = vmatpush1.bf16.msra.mxu0 %v511
    %931 = vmatprep.subr.bf16.mxu0 %v510
    %932 = vmatpush1.bf16.msra.mxu0 %v509
    %933 = vmatprep.subr.bf16.mxu0 0
    %934 = vmatpush2.bf16.msra.mxu0 0
    %935 = vmatprep.subr.bf16.mxu0 0
    %936 = vmatpush2.bf16.msra.mxu0 0
    %937 = vmatprep.subr.bf16.mxu0 0
    %938 = vmatpush2.bf16.msra.mxu0 0
    %939 = vmatprep.subr.bf16.mxu0 0
    %940 = vmatpush2.bf16.msra.mxu0 0
    %941 = vmatprep.subr.bf16.mxu0 0
    %942 = vmatpush2.bf16.msra.mxu0 0
    %943 = vmatprep.subr.bf16.mxu0 0
    %944 = vmatpush2.bf16.msra.mxu0 0
    %945 = vmatprep.subr.bf16.mxu0 0
    %946 = vmatpush2.bf16.msra.mxu0 0
    %947 = vmatprep.subr.bf16.mxu0 0
    %948 = vmatpush2.bf16.msra.mxu0 0
    %949 = vmatprep.mubr.bf16.mxu0 0
    %950 = vmatmul.mubr.bf16.gmra.mxu0 %v915
    %v951 = vpop.f32.mrf.mxu0
    %v952 = vadd.f32 0.0, %v951
    %v953 = vpop.f32.mrf.mxu0
    %v954 = vadd.f32 0.0, %v953
    %v955 = vpop.f32.mrf.mxu0
    %v956 = vpop.f32.mrf.mxu0
    %957 = vdwg.mxu0
    %v960 = vcombine.low %v952, %v954
    %v962 = vunpack.c.l.s4 1983009808
    %v963 = vunpack.c.0.s8 %v962
    %v964 = vlaneseq
    %v965 = vshrl.u32 %v964, 7
    %v966 = vsub.s32 %v963, %v965
    %v967 = vrot.slane %v960, %v966
    %v969 = vadd.f32 %v451, %v967
    %v970 = vxor.u32 %v969, 2147483648
    %v971 = vmul.f32 %v970, 1.442695
    %v972 = vpow.pop %v971
    %v973 = vadd.f32 %v972, 1.0
    %v974 = vrcp.pop %v973
    %v975 = vmul.f32 1.0, %v974
    %v977 = vrot.slane %v969, 2
    %v979 = vtanh.pop %v977
    %980 = vrot.lane.b32.xlu0 %v969, 64
    %v981 = vpop.permute.xlu0 %980
    %v982 = vrot.slane %v981, 2
    %v984 = vxor.u32 %v982, 2147483648
    %v985 = vmul.f32 %v984, 1.442695
    %v986 = vpow.pop %v985
    %v987 = vadd.f32 %v986, 1.0
    %v988 = vrcp.pop %v987
    %v989 = vmul.f32 1.0, %v988
    %v990 = vmul.f32 %v975, %v899
    %v991 = vmul.f32 %v975, %v979
    %993 = vrot.lane.b32.xlu0 %v991, 64
    %v994 = vpop.permute.xlu0 %993
    %v996 = vadd.f32 %v990, %v994
    %v997 = vtanh.pop %v996
    %999 = vrot.lane.b32.xlu0 %v997, 64
    %v1000 = vpop.permute.xlu0 %999
    %v1002 = vmul.f32 %v989, %v1000
    %1004 = vset.pattern.permute.xlu0 0
    %1005 = vperm.xlu0 %1004, %v473
    %v1006 = vpop.permute.xlu0 %1005
    %v1008 = vmul.f32 %v1006, %v1002
    %v1009 = vadd.f32 %v912, %v1008
    %v1010 = vpack.c.bf16 %v1002, %v1002
    %v1012 = vsel %vm525, %v1010, 0
    %1014 = vmatprep.subr.bf16.mxu0 0
    %1015 = vmatpush1.bf16.msra.mxu0 0
    %1016 = vmatprep.subr.bf16.mxu0 0
    %1017 = vmatpush1.bf16.msra.mxu0 0
    %1018 = vmatprep.subr.bf16.mxu0 0
    %1019 = vmatpush1.bf16.msra.mxu0 0
    %1020 = vmatprep.subr.bf16.mxu0 0
    %1021 = vmatpush1.bf16.msra.mxu0 0
    %1022 = vmatprep.subr.bf16.mxu0 %v516
    %1023 = vmatpush1.bf16.msra.mxu0 %v515
    %1024 = vmatprep.subr.bf16.mxu0 %v514
    %1025 = vmatpush1.bf16.msra.mxu0 %v513
    %1026 = vmatprep.subr.bf16.mxu0 %v512
    %1027 = vmatpush1.bf16.msra.mxu0 %v511
    %1028 = vmatprep.subr.bf16.mxu0 %v510
    %1029 = vmatpush1.bf16.msra.mxu0 %v509
    %1030 = vmatprep.subr.bf16.mxu0 0
    %1031 = vmatpush2.bf16.msra.mxu0 0
    %1032 = vmatprep.subr.bf16.mxu0 0
    %1033 = vmatpush2.bf16.msra.mxu0 0
    %1034 = vmatprep.subr.bf16.mxu0 0
    %1035 = vmatpush2.bf16.msra.mxu0 0
    %1036 = vmatprep.subr.bf16.mxu0 0
    %1037 = vmatpush2.bf16.msra.mxu0 0
    %1038 = vmatprep.subr.bf16.mxu0 0
    %1039 = vmatpush2.bf16.msra.mxu0 0
    %1040 = vmatprep.subr.bf16.mxu0 0
    %1041 = vmatpush2.bf16.msra.mxu0 0
    %1042 = vmatprep.subr.bf16.mxu0 0
    %1043 = vmatpush2.bf16.msra.mxu0 0
    %1044 = vmatprep.subr.bf16.mxu0 0
    %1045 = vmatpush2.bf16.msra.mxu0 0
    %1046 = vmatprep.mubr.bf16.mxu0 0
    %1047 = vmatmul.mubr.bf16.gmra.mxu0 %v1012
    %v1048 = vpop.f32.mrf.mxu0
    %v1049 = vadd.f32 0.0, %v1048
    %v1050 = vpop.f32.mrf.mxu0
    %v1051 = vadd.f32 0.0, %v1050
    %v1052 = vpop.f32.mrf.mxu0
    %v1053 = vpop.f32.mrf.mxu0
    %1054 = vdwg.mxu0
    %v1057 = vcombine.low %v1049, %v1051
    %v1059 = vunpack.c.l.s4 1983009808
    %v1060 = vunpack.c.0.s8 %v1059
    %v1061 = vlaneseq
    %v1062 = vshrl.u32 %v1061, 7
    %v1063 = vsub.s32 %v1060, %v1062
    %v1064 = vrot.slane %v1057, %v1063
    %v1066 = vadd.f32 %v459, %v1064
    %v1067 = vxor.u32 %v1066, 2147483648
    %v1068 = vmul.f32 %v1067, 1.442695
    %v1069 = vpow.pop %v1068
    %v1070 = vadd.f32 %v1069, 1.0
    %v1071 = vrcp.pop %v1070
    %v1072 = vmul.f32 1.0, %v1071
    %v1074 = vrot.slane %v1066, 2
    %v1076 = vtanh.pop %v1074
    %1077 = vrot.lane.b32.xlu0 %v1066, 64
    %v1078 = vpop.permute.xlu0 %1077
    %v1079 = vrot.slane %v1078, 2
    %v1081 = vxor.u32 %v1079, 2147483648
    %v1082 = vmul.f32 %v1081, 1.442695
    %v1083 = vpow.pop %v1082
    %v1084 = vadd.f32 %v1083, 1.0
    %v1085 = vrcp.pop %v1084
    %v1086 = vmul.f32 1.0, %v1085
    %v1087 = vmul.f32 %v1072, %v996
    %v1088 = vmul.f32 %v1072, %v1076
    %1090 = vrot.lane.b32.xlu0 %v1088, 64
    %v1091 = vpop.permute.xlu0 %1090
    %v1093 = vadd.f32 %v1087, %v1091
    %v1094 = vtanh.pop %v1093
    %1096 = vrot.lane.b32.xlu0 %v1094, 64
    %v1097 = vpop.permute.xlu0 %1096
    %v1099 = vmul.f32 %v1086, %v1097
    %1101 = vset.pattern.permute.xlu0 0
    %1102 = vperm.xlu0 %1101, %v474
    %v1103 = vpop.permute.xlu0 %1102
    %v1105 = vmul.f32 %v1103, %v1099
    %v1106 = vadd.f32 %v1009, %v1105
    %v1107 = vpack.c.bf16 %v1099, %v1099
    %v1109 = vsel %vm525, %v1107, 0
    %1111 = vmatprep.subr.bf16.mxu0 0
    %1112 = vmatpush1.bf16.msra.mxu0 0
    %1113 = vmatprep.subr.bf16.mxu0 0
    %1114 = vmatpush1.bf16.msra.mxu0 0
    %1115 = vmatprep.subr.bf16.mxu0 0
    %1116 = vmatpush1.bf16.msra.mxu0 0
    %1117 = vmatprep.subr.bf16.mxu0 0
    %1118 = vmatpush1.bf16.msra.mxu0 0
    %1119 = vmatprep.subr.bf16.mxu0 %v516
    %1120 = vmatpush1.bf16.msra.mxu0 %v515
    %1121 = vmatprep.subr.bf16.mxu0 %v514
    %1122 = vmatpush1.bf16.msra.mxu0 %v513
    %1123 = vmatprep.subr.bf16.mxu0 %v512
    %1124 = vmatpush1.bf16.msra.mxu0 %v511
    %1125 = vmatprep.subr.bf16.mxu0 %v510
    %1126 = vmatpush1.bf16.msra.mxu0 %v509
    %1127 = vmatprep.subr.bf16.mxu0 0
    %1128 = vmatpush2.bf16.msra.mxu0 0
    %1129 = vmatprep.subr.bf16.mxu0 0
    %1130 = vmatpush2.bf16.msra.mxu0 0
    %1131 = vmatprep.subr.bf16.mxu0 0
    %1132 = vmatpush2.bf16.msra.mxu0 0
    %1133 = vmatprep.subr.bf16.mxu0 0
    %1134 = vmatpush2.bf16.msra.mxu0 0
    %1135 = vmatprep.subr.bf16.mxu0 0
    %1136 = vmatpush2.bf16.msra.mxu0 0
    %1137 = vmatprep.subr.bf16.mxu0 0
    %1138 = vmatpush2.bf16.msra.mxu0 0
    %1139 = vmatprep.subr.bf16.mxu0 0
    %1140 = vmatpush2.bf16.msra.mxu0 0
    %1141 = vmatprep.subr.bf16.mxu0 0
    %1142 = vmatpush2.bf16.msra.mxu0 0
    %1143 = vmatprep.mubr.bf16.mxu0 0
    %1144 = vmatmul.mubr.bf16.gmra.mxu0 %v1109
    %v1145 = vpop.f32.mrf.mxu0
    %v1146 = vadd.f32 0.0, %v1145
    %v1147 = vpop.f32.mrf.mxu0
    %v1148 = vadd.f32 0.0, %v1147
    %v1149 = vpop.f32.mrf.mxu0
    %v1150 = vpop.f32.mrf.mxu0
    %1151 = vdwg.mxu0
    %v1154 = vcombine.low %v1146, %v1148
    %v1156 = vunpack.c.l.s4 1983009808
    %v1157 = vunpack.c.0.s8 %v1156
    %v1158 = vlaneseq
    %v1159 = vshrl.u32 %v1158, 7
    %v1160 = vsub.s32 %v1157, %v1159
    %v1161 = vrot.slane %v1154, %v1160
    %v1163 = vadd.f32 %v458, %v1161
    %v1164 = vxor.u32 %v1163, 2147483648
    %v1165 = vmul.f32 %v1164, 1.442695
    %v1166 = vpow.pop %v1165
    %v1167 = vadd.f32 %v1166, 1.0
    %v1168 = vrcp.pop %v1167
    %v1169 = vmul.f32 1.0, %v1168
    %v1171 = vrot.slane %v1163, 2
    %v1173 = vtanh.pop %v1171
    %1174 = vrot.lane.b32.xlu0 %v1163, 64
    %v1175 = vpop.permute.xlu0 %1174
    %v1176 = vrot.slane %v1175, 2
    %v1178 = vxor.u32 %v1176, 2147483648
    %v1179 = vmul.f32 %v1178, 1.442695
    %v1180 = vpow.pop %v1179
    %v1181 = vadd.f32 %v1180, 1.0
    %v1182 = vrcp.pop %v1181
    %v1183 = vmul.f32 1.0, %v1182
    %v1184 = vmul.f32 %v1169, %v1093
    %v1185 = vmul.f32 %v1169, %v1173
    %1187 = vrot.lane.b32.xlu0 %v1185, 64
    %v1188 = vpop.permute.xlu0 %1187
    %v1190 = vadd.f32 %v1184, %v1188
    %v1191 = vtanh.pop %v1190
    %1193 = vrot.lane.b32.xlu0 %v1191, 64
    %v1194 = vpop.permute.xlu0 %1193
    %v1196 = vmul.f32 %v1183, %v1194
    %1198 = vset.pattern.permute.xlu0 0
    %1199 = vperm.xlu0 %1198, %v475
    %v1200 = vpop.permute.xlu0 %1199
    %v1202 = vmul.f32 %v1200, %v1196
    %v1203 = vadd.f32 %v1106, %v1202
    %v1204 = vpack.c.bf16 %v1196, %v1196
    %v1206 = vsel %vm525, %v1204, 0
    %1208 = vmatprep.subr.bf16.mxu0 0
    %1209 = vmatpush1.bf16.msra.mxu0 0
    %1210 = vmatprep.subr.bf16.mxu0 0
    %1211 = vmatpush1.bf16.msra.mxu0 0
    %1212 = vmatprep.subr.bf16.mxu0 0
    %1213 = vmatpush1.bf16.msra.mxu0 0
    %1214 = vmatprep.subr.bf16.mxu0 0
    %1215 = vmatpush1.bf16.msra.mxu0 0
    %1216 = vmatprep.subr.bf16.mxu0 %v516
    %1217 = vmatpush1.bf16.msra.mxu0 %v515
    %1218 = vmatprep.subr.bf16.mxu0 %v514
    %1219 = vmatpush1.bf16.msra.mxu0 %v513
    %1220 = vmatprep.subr.bf16.mxu0 %v512
    %1221 = vmatpush1.bf16.msra.mxu0 %v511
    %1222 = vmatprep.subr.bf16.mxu0 %v510
    %1223 = vmatpush1.bf16.msra.mxu0 %v509
    %1224 = vmatprep.subr.bf16.mxu0 0
    %1225 = vmatpush2.bf16.msra.mxu0 0
    %1226 = vmatprep.subr.bf16.mxu0 0
    %1227 = vmatpush2.bf16.msra.mxu0 0
    %1228 = vmatprep.subr.bf16.mxu0 0
    %1229 = vmatpush2.bf16.msra.mxu0 0
    %1230 = vmatprep.subr.bf16.mxu0 0
    %1231 = vmatpush2.bf16.msra.mxu0 0
    %1232 = vmatprep.subr.bf16.mxu0 0
    %1233 = vmatpush2.bf16.msra.mxu0 0
    %1234 = vmatprep.subr.bf16.mxu0 0
    %1235 = vmatpush2.bf16.msra.mxu0 0
    %1236 = vmatprep.subr.bf16.mxu0 0
    %1237 = vmatpush2.bf16.msra.mxu0 0
    %1238 = vmatprep.subr.bf16.mxu0 0
    %1239 = vmatpush2.bf16.msra.mxu0 0
    %1240 = vmatprep.mubr.bf16.mxu0 0
    %1241 = vmatmul.mubr.bf16.gmra.mxu0 %v1206
    %v1242 = vpop.f32.mrf.mxu0
    %v1243 = vadd.f32 0.0, %v1242
    %v1244 = vpop.f32.mrf.mxu0
    %v1245 = vadd.f32 0.0, %v1244
    %v1246 = vpop.f32.mrf.mxu0
    %v1247 = vpop.f32.mrf.mxu0
    %1248 = vdwg.mxu0
    %v1251 = vcombine.low %v1243, %v1245
    %v1253 = vunpack.c.l.s4 1983009808
    %v1254 = vunpack.c.0.s8 %v1253
    %v1255 = vlaneseq
    %v1256 = vshrl.u32 %v1255, 7
    %v1257 = vsub.s32 %v1254, %v1256
    %v1258 = vrot.slane %v1251, %v1257
    %v1260 = vadd.f32 %v460, %v1258
    %v1261 = vxor.u32 %v1260, 2147483648
    %v1262 = vmul.f32 %v1261, 1.442695
    %v1263 = vpow.pop %v1262
    %v1264 = vadd.f32 %v1263, 1.0
    %v1265 = vrcp.pop %v1264
    %v1266 = vmul.f32 1.0, %v1265
    %v1268 = vrot.slane %v1260, 2
    %v1270 = vtanh.pop %v1268
    %1271 = vrot.lane.b32.xlu0 %v1260, 64
    %v1272 = vpop.permute.xlu0 %1271
    %v1273 = vrot.slane %v1272, 2
    %v1275 = vxor.u32 %v1273, 2147483648
    %v1276 = vmul.f32 %v1275, 1.442695
    %v1277 = vpow.pop %v1276
    %v1278 = vadd.f32 %v1277, 1.0
    %v1279 = vrcp.pop %v1278
    %v1280 = vmul.f32 1.0, %v1279
    %v1281 = vmul.f32 %v1266, %v1190
    %v1282 = vmul.f32 %v1266, %v1270
    %1284 = vrot.lane.b32.xlu0 %v1282, 64
    %v1285 = vpop.permute.xlu0 %1284
    %v1287 = vadd.f32 %v1281, %v1285
    %v1288 = vtanh.pop %v1287
    %1290 = vrot.lane.b32.xlu0 %v1288, 64
    %v1291 = vpop.permute.xlu0 %1290
    %v1293 = vmul.f32 %v1280, %v1291
    %1295 = vset.pattern.permute.xlu0 0
    %1296 = vperm.xlu0 %1295, %v476
    %v1297 = vpop.permute.xlu0 %1296
    %v1299 = vmul.f32 %v1297, %v1293
    %v1300 = vadd.f32 %v1203, %v1299
    %v1301 = vpack.c.bf16 %v1300, %v1300
    %v1302 = vld [vmem:[%s11] sm:$0xf]
    %v1303 = vld [vmem:[%s11 + $0x4] sm:$0xf]
    %v1304 = vld [vmem:[%s11 + $0x8] sm:$0xf]
    %v1305 = vld [vmem:[%s11 + $0xc] sm:$0xf]
    %v1306 = vld [vmem:[%s11 + $0x10] sm:$0xf]
    %v1307 = vld [vmem:[%s11 + $0x14] sm:$0xf]
    %v1308 = vld [vmem:[%s11 + $0x18] sm:$0xf]
    %v1309 = vld [vmem:[%s11 + $0x1c] sm:$0xf]
    %v1310 = vld [vmem:[#allocation5] sm:$0x1]
    %v1311 = vld [vmem:[#allocation16] sm:$0xf]
    %v1312 = vld [vmem:[#allocation16 + $0x4] sm:$0xf]
    %v1313 = vld [vmem:[#allocation16 + $0x8] sm:$0xf]
    %v1314 = vld [vmem:[#allocation16 + $0xc] sm:$0x3]
    %v1319 = vunpack.c.l.b16 %v1311
    %v1320 = vunpack.c.l.b16 %v1312
    %v1321 = vunpack.c.l.b16 %v1313
    %v1322 = vunpack.c.l.b16 %v1314
    %v1323 = vpack.c.b16 %v1320, %v1319
    %v1324 = vpack.c.b16 %v1322, %v1321
    %vm1326 = vcmask 220160
    %v1328 = vsel %vm1326, %v1310, 0
    %vm1330 = vcmask 1044480
    %vm1331 = vcmask 1045504
    %v1332 = vsel %vm1330, 4294967295, 65535
    %v1333 = vsel %vm1331, %v1332, 0
    %v1335 = vand.u32 %v1324, %v1333
    %1337 = vmatprep.subr.bf16.mxu0 0
    %1338 = vmatpush1.bf16.msra.mxu0 0
    %1339 = vmatprep.subr.bf16.mxu0 0
    %1340 = vmatpush1.bf16.msra.mxu0 0
    %1341 = vmatprep.subr.bf16.mxu0 0
    %1342 = vmatpush1.bf16.msra.mxu0 0
    %1343 = vmatprep.subr.bf16.mxu0 0
    %1344 = vmatpush1.bf16.msra.mxu0 0
    %1345 = vmatprep.subr.bf16.mxu0 0
    %1346 = vmatpush1.bf16.msra.mxu0 0
    %1347 = vmatprep.subr.bf16.mxu0 0
    %1348 = vmatpush1.bf16.msra.mxu0 0
    %1349 = vmatprep.subr.bf16.mxu0 0
    %1350 = vmatpush1.bf16.msra.mxu0 %v1335
    %1351 = vmatprep.subr.bf16.mxu0 0
    %1352 = vmatpush1.bf16.msra.mxu0 %v1323
    %1353 = vmatprep.subr.bf16.mxu0 0
    %1354 = vmatpush2.bf16.msra.mxu0 0
    %1355 = vmatprep.subr.bf16.mxu0 0
    %1356 = vmatpush2.bf16.msra.mxu0 0
    %1357 = vmatprep.subr.bf16.mxu0 0
    %1358 = vmatpush2.bf16.msra.mxu0 0
    %1359 = vmatprep.subr.bf16.mxu0 0
    %1360 = vmatpush2.bf16.msra.mxu0 0
    %1361 = vmatprep.subr.bf16.mxu0 0
    %1362 = vmatpush2.bf16.msra.mxu0 0
    %1363 = vmatprep.subr.bf16.mxu0 0
    %1364 = vmatpush2.bf16.msra.mxu0 0
    %1365 = vmatprep.subr.bf16.mxu0 0
    %1366 = vmatpush2.bf16.msra.mxu0 0
    %1367 = vmatprep.subr.bf16.mxu0 0
    %1368 = vmatpush2.bf16.msra.mxu0 0
    %1369 = vmatprep.mubr.bf16.mxu0 0
    %1370 = vmatmul.mubr.bf16.gmra.mxu0 %v1328
    %v1371 = vpop.f32.mrf.mxu0
    %v1372 = vadd.f32 0.0, %v1371
    %v1373 = vpop.f32.mrf.mxu0
    %v1374 = vpop.f32.mrf.mxu0
    %v1375 = vpop.f32.mrf.mxu0
    %1376 = vdwg.mxu0
    %v1385 = vunpack.c.l.b16 %v1302
    %v1386 = vunpack.c.l.b16 %v1303
    %v1387 = vunpack.c.l.b16 %v1304
    %v1388 = vunpack.c.l.b16 %v1305
    %v1389 = vunpack.c.l.b16 %v1306
    %v1390 = vunpack.c.l.b16 %v1307
    %v1391 = vunpack.c.l.b16 %v1308
    %v1392 = vunpack.c.l.b16 %v1309
    %v1393 = vpack.c.b16 %v1386, %v1385
    %v1394 = vpack.c.b16 %v1388, %v1387
    %v1395 = vpack.c.b16 %v1390, %v1389
    %v1396 = vpack.c.b16 %v1392, %v1391
    %v1402 = vsel %vm525, %v1301, 0
    %1404 = vmatprep.subr.bf16.mxu0 0
    %1405 = vmatpush1.bf16.msra.mxu0 0
    %1406 = vmatprep.subr.bf16.mxu0 0
    %1407 = vmatpush1.bf16.msra.mxu0 0
    %1408 = vmatprep.subr.bf16.mxu0 0
    %1409 = vmatpush1.bf16.msra.mxu0 0
    %1410 = vmatprep.subr.bf16.mxu0 0
    %1411 = vmatpush1.bf16.msra.mxu0 0
    %1412 = vmatprep.subr.bf16.mxu0 0
    %1413 = vmatpush1.bf16.msra.mxu0 %v1396
    %1414 = vmatprep.subr.bf16.mxu0 0
    %1415 = vmatpush1.bf16.msra.mxu0 %v1395
    %1416 = vmatprep.subr.bf16.mxu0 0
    %1417 = vmatpush1.bf16.msra.mxu0 %v1394
    %1418 = vmatprep.subr.bf16.mxu0 0
    %1419 = vmatpush1.bf16.msra.mxu0 %v1393
    %1420 = vmatprep.subr.bf16.mxu0 0
    %1421 = vmatpush2.bf16.msra.mxu0 0
    %1422 = vmatprep.subr.bf16.mxu0 0
    %1423 = vmatpush2.bf16.msra.mxu0 0
    %1424 = vmatprep.subr.bf16.mxu0 0
    %1425 = vmatpush2.bf16.msra.mxu0 0
    %1426 = vmatprep.subr.bf16.mxu0 0
    %1427 = vmatpush2.bf16.msra.mxu0 0
    %1428 = vmatprep.subr.bf16.mxu0 0
    %1429 = vmatpush2.bf16.msra.mxu0 0
    %1430 = vmatprep.subr.bf16.mxu0 0
    %1431 = vmatpush2.bf16.msra.mxu0 0
    %1432 = vmatprep.subr.bf16.mxu0 0
    %1433 = vmatpush2.bf16.msra.mxu0 0
    %1434 = vmatprep.subr.bf16.mxu0 0
    %1435 = vmatpush2.bf16.msra.mxu0 0
    %1436 = vmatprep.mubr.bf16.mxu0 0
    %1437 = vmatmul.mubr.bf16.gmra.mxu0 %v1402
    %v1438 = vpop.f32.mrf.mxu0
    %v1439 = vadd.f32 %v1372, %v1438
    %v1440 = vpop.f32.mrf.mxu0
    %v1441 = vpop.f32.mrf.mxu0
    %v1442 = vpop.f32.mrf.mxu0
    %1443 = vdwg.mxu0
    %v1444 = vld [vmem:[%s13] sm:$0x1]
    %v1446 = vlaneseq
    %v1447 = vshrl.u32 %v1446, 7
    %v1448 = vsub.s32 0, %v1447
    %v1449 = vrot.slane %v1444, %v1448
    %v1451 = vadd.f32 %v1439, %v1449
    %v1452 = vmax.f32 %v1451, 0.0
    %v1453 = vpack.c.bf16 %v1452, %v1452
    %v1454 = vld [vmem:[#allocation17] sm:$0xf]
    %v1455 = vld [vmem:[#allocation17 + $0x4] sm:$0xf]
    %v1456 = vld [vmem:[#allocation17 + $0x8] sm:$0xf]
    %v1457 = vld [vmem:[#allocation17 + $0xc] sm:$0xf]
    %v1458 = vld [vmem:[#allocation17 + $0x10] sm:$0xf]
    %v1459 = vld [vmem:[#allocation17 + $0x14] sm:$0xf]
    %v1460 = vld [vmem:[#allocation17 + $0x18] sm:$0xf]
    %v1461 = vld [vmem:[#allocation17 + $0x1c] sm:$0xf]
    %v1462 = vld [vmem:[%s15] sm:$0x1]
    %v1464 = vlaneseq
    %v1465 = vshrl.u32 %v1464, 7
    %v1466 = vsub.s32 0, %v1465
    %v1467 = vrot.slane %v1462, %v1466
    %v1477 = vunpack.c.l.b16 %v1454
    %v1478 = vunpack.c.l.b16 %v1455
    %v1479 = vunpack.c.l.b16 %v1456
    %v1480 = vunpack.c.l.b16 %v1457
    %v1481 = vunpack.c.l.b16 %v1458
    %v1482 = vunpack.c.l.b16 %v1459
    %v1483 = vunpack.c.l.b16 %v1460
    %v1484 = vunpack.c.l.b16 %v1461
    %v1485 = vpack.c.b16 %v1478, %v1477
    %v1486 = vpack.c.b16 %v1480, %v1479
    %v1487 = vpack.c.b16 %v1482, %v1481
    %v1488 = vpack.c.b16 %v1484, %v1483
    %v1494 = vsel %vm525, %v1453, 0
    %1496 = vmatprep.subr.bf16.mxu0 0
    %1497 = vmatpush1.bf16.msra.mxu0 0
    %1498 = vmatprep.subr.bf16.mxu0 0
    %1499 = vmatpush1.bf16.msra.mxu0 0
    %1500 = vmatprep.subr.bf16.mxu0 0
    %1501 = vmatpush1.bf16.msra.mxu0 0
    %1502 = vmatprep.subr.bf16.mxu0 0
    %1503 = vmatpush1.bf16.msra.mxu0 0
    %1504 = vmatprep.subr.bf16.mxu0 0
    %1505 = vmatpush1.bf16.msra.mxu0 %v1488
    %1506 = vmatprep.subr.bf16.mxu0 0
    %1507 = vmatpush1.bf16.msra.mxu0 %v1487
    %1508 = vmatprep.subr.bf16.mxu0 0
    %1509 = vmatpush1.bf16.msra.mxu0 %v1486
    %1510 = vmatprep.subr.bf16.mxu0 0
    %1511 = vmatpush1.bf16.msra.mxu0 %v1485
    %1512 = vmatprep.subr.bf16.mxu0 0
    %1513 = vmatpush2.bf16.msra.mxu0 0
    %1514 = vmatprep.subr.bf16.mxu0 0
    %1515 = vmatpush2.bf16.msra.mxu0 0
    %1516 = vmatprep.subr.bf16.mxu0 0
    %1517 = vmatpush2.bf16.msra.mxu0 0
    %1518 = vmatprep.subr.bf16.mxu0 0
    %1519 = vmatpush2.bf16.msra.mxu0 0
    %1520 = vmatprep.subr.bf16.mxu0 0
    %1521 = vmatpush2.bf16.msra.mxu0 0
    %1522 = vmatprep.subr.bf16.mxu0 0
    %1523 = vmatpush2.bf16.msra.mxu0 0
    %1524 = vmatprep.subr.bf16.mxu0 0
    %1525 = vmatpush2.bf16.msra.mxu0 0
    %1526 = vmatprep.subr.bf16.mxu0 0
    %1527 = vmatpush2.bf16.msra.mxu0 0
    %1528 = vmatprep.mubr.bf16.mxu0 0
    %1529 = vmatmul.mubr.bf16.gmra.mxu0 %v1494
    %v1530 = vpop.f32.mrf.mxu0
    %v1531 = vadd.f32 %v1467, %v1530
    %v1532 = vpop.f32.mrf.mxu0
    %v1533 = vpop.f32.mrf.mxu0
    %v1534 = vpop.f32.mrf.mxu0
    %1535 = vdwg.mxu0
    %v1536 = vld [vmem:[#allocation7] sm:$0x3]
    %vm1537 = vcmp.gt.f32.partialorder %v1536, 0.5
    %v1538 = vsel %vm1537, -inf, %v1531
    %1539 = vst [vmem:[#allocation19] sm:$0x3] %v1538
    // Predicated region
    $region106: #{tpu_custom_call.1} parent=1 // pred_check
      _
    $region107: #{tpu_custom_call.1} parent=1 // pred_check_branch
      %1541 = sbr.rel (0) target = $region109
    $region108: #{tpu_custom_call.1} parent=1 // pred_region
      %s1543 = ssub.s32 32, 32
      %1544 = vsyncadd [#allocation4], %s1543
      %s1546 = sshll.u32 [#allocation19], 4
      %s1547 = int_to_ptr.vmem [resolvable:$true] %s1546
      %1549 = dma.vmem_to_hbm [thread:$0]  %s1547, 32, %s16, [#allocation4]
    $region109: #{tpu_custom_call.1} parent=1 // pred_fallthru
      _
    // Predicated region
    $region110: #{tpu_custom_call.1} parent=1 // pred_check
      _
    $region111: #{tpu_custom_call.1} parent=1 // pred_check_branch
      %1551 = sbr.rel (0) target = $region113
    $region112: #{tpu_custom_call.1} parent=1 // pred_region
      %1552 = dma.done [#allocation4], 32
    $region113: #{tpu_custom_call.1} parent=1 // pred_fallthru
      _
    %1553 = vsyncpa [#allocation3], 1
    %1554 = vsyncpa [#allocation6], 1
    %1555 = vsyncpa [#allocation9], 1
    %1556 = vsyncpa [#allocation12], 1
    %1557 = vsyncpa [#allocation15], 1
    %1558 = vsyncpa [#allocation18], 1
    %1559 = vsyncpa [#allocation4], 1

</llo_original>
